<compile_context>
chip_gen: v7x
topology: tpu7x:2x2x1
jax: 0.10.0
libtpu: 0.0.40
codegen_flags: <defaults>
</compile_context>

<pallas_src>
import math

import jax
import jax.numpy as jnp
from jax import lax
from jax.experimental import pallas as pl
from jax.experimental.pallas import tpu as pltpu

_INV_SQRT2 = 1.0 / math.sqrt(2.0)
_BN_EPS = 1e-5


def _round_up(x, m):
    return (x + m - 1) // m * m


def _matmul_gelu_bn_kernel(cols_ref, w_ref, b_ref, scale_ref, shift_ref, o_ref):
    """One M-tile of Conv(as matmul) + GELU + BN.

    cols_ref : (TILE_M, K)      bf16 im2col rows, K = 9*Cin
    w_ref    : (K, COUT_P)      bf16 conv weight, Cout zero-padded to 128 lanes
    b_ref    : (1, COUT_P)      f32 conv bias (padded)
    scale_ref: (1, COUT_P)      f32 BN gamma / sqrt(running_var + eps) (padded)
    shift_ref: (1, COUT_P)      f32 BN beta - running_mean * scale (padded)
    o_ref    : (TILE_M, COUT_P) f32 (last layer) or bf16 (intermediate layers)
    """
    acc = jnp.dot(cols_ref[...], w_ref[...], preferred_element_type=jnp.float32)
    acc = acc + b_ref[...]
    # exact GELU (erf based) -- matches torch.nn.GELU() default
    acc = 0.5 * acc * (1.0 + lax.erf(acc * _INV_SQRT2))
    # BatchNorm2d folded into a per-channel affine
    o_ref[...] = (acc * scale_ref[...] + shift_ref[...]).astype(o_ref.dtype)


def conv_gelu_bn(x, w, b, scale, shift, stride, *, out_dtype=jnp.float32,
                 tile_m=512):
    """One Conv2d(3x3, stride, pad=1) + GELU + BN layer.

    x: (N, H, W, Cin) f32/bf16, w: (3, 3, Cin, Cout) HWIO, b/scale/shift: (Cout,)
    returns (N, Ho, Wo, Cout) in out_dtype
    """
    n, h, wd, cin = x.shape
    cout = w.shape[-1]
    ho = (h + 2 - 3) // stride + 1
    wo = (wd + 2 - 3) // stride + 1

    # --- glue: pad + im2col (layout only; fused by XLA inside the jit) ---
    xp = jnp.pad(x, ((0, 0), (1, 1), (1, 1), (0, 0)))
    taps = []
    for kh in range(3):
        for kw in range(3):
            taps.append(
                lax.slice(
                    xp,
                    (0, kh, kw, 0),
                    (n, kh + (ho - 1) * stride + 1, kw + (wo - 1) * stride + 1, cin),
                    (1, stride, stride, 1),
                )
            )
    # (N, Ho, Wo, 9*Cin) with (kh, kw, Cin) minor order -> matches w.reshape(K, Cout)
    cols = jnp.concatenate(taps, axis=-1)
    m = n * ho * wo
    k = 9 * cin
    cols = cols.reshape(m, k)

    # --- padding for lane-dense stores + tiling, bf16 MXU operands ---
    cout_p = _round_up(cout, 128)                 # lane-dense output stores
    tm = min(tile_m, _round_up(m, 16))            # bf16-friendly sublane multiple
    m_p = _round_up(m, tm)

    cols_p = jnp.pad(cols, ((0, m_p - m), (0, 0))).astype(jnp.bfloat16)
    w_p = jnp.pad(w.reshape(k, cout), ((0, 0), (0, cout_p - cout))).astype(jnp.bfloat16)
    b_p = jnp.pad(b, (0, cout_p - cout)).reshape(1, cout_p).astype(jnp.float32)
    scale_p = jnp.pad(scale, (0, cout_p - cout)).reshape(1, cout_p).astype(jnp.float32)
    shift_p = jnp.pad(shift, (0, cout_p - cout)).reshape(1, cout_p).astype(jnp.float32)

    grid = (m_p // tm,)
    out = pl.pallas_call(
        _matmul_gelu_bn_kernel,
        out_shape=jax.ShapeDtypeStruct((m_p, cout_p), out_dtype),
        grid_spec=pltpu.PrefetchScalarGridSpec(
            num_scalar_prefetch=0,
            grid=grid,
            in_specs=[
                pl.BlockSpec((tm, k), lambda i: (i, 0)),        # cols: tiled over M
                pl.BlockSpec((k, cout_p), lambda i: (0, 0)),    # weight: resident
                pl.BlockSpec((1, cout_p), lambda i: (0, 0)),    # bias
                pl.BlockSpec((1, cout_p), lambda i: (0, 0)),    # bn scale
                pl.BlockSpec((1, cout_p), lambda i: (0, 0)),    # bn shift
            ],
            out_specs=pl.BlockSpec((tm, cout_p), lambda i: (i, 0)),
        ),
        compiler_params=pltpu.CompilerParams(
            dimension_semantics=("parallel",),    # independent M tiles -> megacore
        ),
    )(cols_p, w_p, b_p, scale_p, shift_p)

    return out[:m, :cout].reshape(n, ho, wo, cout)


def init_params(key, in_channels, out_channels):
    """Deterministic synthetic parameters for the 4 conv+BN layers."""
    mid = out_channels // 2
    layer_dims = [(in_channels, mid), (mid, mid), (mid, out_channels),
                  (out_channels, out_channels)]
    params = []
    for (cin, cout) in layer_dims:
        key, kw, kb, kg, kbeta, km, kv = jax.random.split(key, 7)
        w = 0.1 * jax.random.normal(kw, (3, 3, cin, cout), jnp.float32)      # HWIO
        b = 0.1 * jax.random.normal(kb, (cout,), jnp.float32)
        gamma = 1.0 + 0.1 * jax.random.normal(kg, (cout,), jnp.float32)
        beta = 0.1 * jax.random.normal(kbeta, (cout,), jnp.float32)
        run_mean = 0.1 * jax.random.normal(km, (cout,), jnp.float32)
        run_var = jnp.abs(jax.random.normal(kv, (cout,), jnp.float32)) + 0.5
        # TODO(synk): BatchNorm2d is implemented in inference mode (running stats),
        # not training-mode batch statistics.
        scale = gamma / jnp.sqrt(run_var + _BN_EPS)
        shift = beta - run_mean * scale
        params.append(dict(w=w, b=b, scale=scale, shift=shift))
    return params


@jax.jit
def patch_embed(x_nchw, params):
    """Forward pass of PatchEmbed. Input NCHW (PyTorch convention), output NCHW."""
    x = jnp.transpose(x_nchw, (0, 2, 3, 1))        # NCHW -> NHWC
    strides = (2, 1, 2, 1)
    n_layers = len(params)
    for li, (p, s) in enumerate(zip(params, strides)):
        # Intermediate activations in bf16 (the next layer's matmul operands are
        # bf16 anyway, so this adds no extra rounding but halves HBM traffic).
        out_dtype = jnp.float32 if li == n_layers - 1 else jnp.bfloat16
        x = conv_gelu_bn(x, p["w"], p["b"], p["scale"], p["shift"], s,
                         out_dtype=out_dtype)
    return jnp.transpose(x, (0, 3, 1, 2))          # NHWC -> NCHW


# ---- pure-JAX (f32) reference for a sanity check ----
def _reference(x_nchw, params):
    x = jnp.transpose(x_nchw, (0, 2, 3, 1))
    strides = (2, 1, 2, 1)
    for p, s in zip(params, strides):
        y = lax.conv_general_dilated(
            x, p["w"], window_strides=(s, s), padding=((1, 1), (1, 1)),
            dimension_numbers=("NHWC", "HWIO", "NHWC"),
        ) + p["b"]
        y = 0.5 * y * (1.0 + lax.erf(y * _INV_SQRT2))
        x = y * p["scale"] + p["shift"]
    return jnp.transpose(x, (0, 3, 1, 2))


if __name__ == "__main__":
    key = jax.random.PRNGKey(0)
    k_x, k_p = jax.random.split(key)

    in_channels, out_channels = 4, 32
    x = jax.random.normal(k_x, (2, in_channels, 16, 16), jnp.float32)   # NCHW, like PyTorch

    params = init_params(k_p, in_channels, out_channels)

    out = jax.block_until_ready(patch_embed(x, params))
    assert out.shape == (2, out_channels, 4, 4), out.shape

    ref = jax.block_until_ready(_reference(x, params))
    # Tolerance accounts for bf16 MXU operands / bf16 inter-layer activations in
    # the kernel vs. the f32 reference (accumulation is still f32); real bugs
    # produce O(0.1-1) discrepancies.
    err = float(jnp.max(jnp.abs(out - ref)))
    assert jnp.allclose(out, ref, rtol=3e-2, atol=3e-2), err

    print("KERNEL_OK")
</pallas_src>

<mosaic_0001>
module attributes {stable_mosaic.version = 11 : i64} {
  func.func @_matmul_gelu_bn_kernel(%arg0: i32, %arg1: memref<128x36xbf16, #tpu.memory_space<vmem>>, %arg2: memref<36x128xbf16, #tpu.memory_space<vmem>>, %arg3: memref<1x128xf32, #tpu.memory_space<vmem>>, %arg4: memref<1x128xf32, #tpu.memory_space<vmem>>, %arg5: memref<1x128xf32, #tpu.memory_space<vmem>>, %arg6: memref<128x128xbf16, #tpu.memory_space<vmem>>) attributes {dimension_semantics = [#tpu.dimension_semantics<parallel>], iteration_bounds = array<i64: 1>, scalar_prefetch = 0 : i64, scratch_operands = 0 : i64, tpu.core_type = #tpu.core_type<tc>, window_params = [{transform_indices = @transform_0, window_bounds = array<i64: 128, 36>}, {pipeline_mode = #tpu.pipeline_mode<synchronous>, transform_indices = @transform_1, window_bounds = array<i64: 36, 128>}, {pipeline_mode = #tpu.pipeline_mode<synchronous>, transform_indices = @transform_2, window_bounds = array<i64: 1, 128>}, {pipeline_mode = #tpu.pipeline_mode<synchronous>, transform_indices = @transform_3, window_bounds = array<i64: 1, 128>}, {pipeline_mode = #tpu.pipeline_mode<synchronous>, transform_indices = @transform_4, window_bounds = array<i64: 1, 128>}, {transform_indices = @transform_5, window_bounds = array<i64: 128, 128>}]} {
    %c0 = arith.constant 0 : index
    %c0_0 = arith.constant 0 : index
    %0 = vector.load %arg1[%c0, %c0_0] : memref<128x36xbf16, #tpu.memory_space<vmem>>, vector<128x36xbf16>
    %c0_1 = arith.constant 0 : index
    %c0_2 = arith.constant 0 : index
    %1 = vector.load %arg2[%c0_1, %c0_2] : memref<36x128xbf16, #tpu.memory_space<vmem>>, vector<36x128xbf16>
    %cst = arith.constant dense<0.000000e+00> : vector<128x128xf32>
    %2 = tpu.matmul %0, %1, %cst {dimension_numbers = #tpu.dot_dimension_numbers<[1], [0], [0], [1], [0, 0, 1, 1], [], []>} : vector<128x36xbf16>, vector<36x128xbf16>, vector<128x128xf32> -> vector<128x128xf32>
    %c0_3 = arith.constant 0 : index
    %c0_4 = arith.constant 0 : index
    %3 = vector.load %arg3[%c0_3, %c0_4] : memref<1x128xf32, #tpu.memory_space<vmem>>, vector<1x128xf32>
    %4 = vector.broadcast %3 : vector<1x128xf32> to vector<128x128xf32>
    %5 = arith.addf %2, %4 : vector<128x128xf32>
    %cst_5 = arith.constant 5.000000e-01 : f32
    %6 = vector.broadcast %cst_5 : f32 to vector<128x128xf32>
    %7 = arith.mulf %6, %5 : vector<128x128xf32>
    %cst_6 = arith.constant 0.707106769 : f32
    %8 = vector.broadcast %cst_6 : f32 to vector<128x128xf32>
    %9 = arith.mulf %5, %8 : vector<128x128xf32>
    %10 = math.erf %9 : vector<128x128xf32>
    %cst_7 = arith.constant 1.000000e+00 : f32
    %11 = vector.broadcast %cst_7 : f32 to vector<128x128xf32>
    %12 = arith.addf %11, %10 : vector<128x128xf32>
    %13 = arith.mulf %7, %12 : vector<128x128xf32>
    %c0_8 = arith.constant 0 : index
    %c0_9 = arith.constant 0 : index
    %14 = vector.load %arg4[%c0_8, %c0_9] : memref<1x128xf32, #tpu.memory_space<vmem>>, vector<1x128xf32>
    %15 = vector.broadcast %14 : vector<1x128xf32> to vector<128x128xf32>
    %16 = arith.mulf %13, %15 : vector<128x128xf32>
    %c0_10 = arith.constant 0 : index
    %c0_11 = arith.constant 0 : index
    %17 = vector.load %arg5[%c0_10, %c0_11] : memref<1x128xf32, #tpu.memory_space<vmem>>, vector<1x128xf32>
    %18 = vector.broadcast %17 : vector<1x128xf32> to vector<128x128xf32>
    %19 = arith.addf %16, %18 : vector<128x128xf32>
    %20 = arith.truncf %19 : vector<128x128xf32> to vector<128x128xbf16>
    %c0_12 = arith.constant 0 : index
    %c0_13 = arith.constant 0 : index
    %21 = vector.load %arg6[%c0_12, %c0_13] : memref<128x128xbf16, #tpu.memory_space<vmem>>, vector<128x128xbf16>
    tpu.vector_store %arg6[%c0_12, %c0_13], %20 {strides = array<i32>} : memref<128x128xbf16, #tpu.memory_space<vmem>>, vector<128x128xbf16>,
    return
  }
  func.func @transform_0(%arg0: i32) -> (i32, i32) {
    %c0_i32 = arith.constant 0 : i32
    %c0_i32_0 = arith.constant 0 : i32
    return %arg0, %c0_i32 : i32, i32
  }
  func.func @transform_1(%arg0: i32) -> (i32, i32) {
    %c0_i32 = arith.constant 0 : i32
    %c0_i32_0 = arith.constant 0 : i32
    %c0_i32_1 = arith.constant 0 : i32
    return %c0_i32, %c0_i32_0 : i32, i32
  }
  func.func @transform_2(%arg0: i32) -> (i32, i32) {
    %c0_i32 = arith.constant 0 : i32
    %c0_i32_0 = arith.constant 0 : i32
    %c0_i32_1 = arith.constant 0 : i32
    return %c0_i32, %c0_i32_0 : i32, i32
  }
  func.func @transform_3(%arg0: i32) -> (i32, i32) {
    %c0_i32 = arith.constant 0 : i32
    %c0_i32_0 = arith.constant 0 : i32
    %c0_i32_1 = arith.constant 0 : i32
    return %c0_i32, %c0_i32_0 : i32, i32
  }
  func.func @transform_4(%arg0: i32) -> (i32, i32) {
    %c0_i32 = arith.constant 0 : i32
    %c0_i32_0 = arith.constant 0 : i32
    %c0_i32_1 = arith.constant 0 : i32
    return %c0_i32, %c0_i32_0 : i32, i32
  }
  func.func @transform_5(%arg0: i32) -> (i32, i32) {
    %c0_i32 = arith.constant 0 : i32
    %c0_i32_0 = arith.constant 0 : i32
    return %arg0, %c0_i32 : i32, i32
  }
}

module attributes {stable_mosaic.version = 11 : i64} {
  func.func @_matmul_gelu_bn_kernel(%arg0: i32, %arg1: memref<128x144xbf16, #tpu.memory_space<vmem>>, %arg2: memref<144x128xbf16, #tpu.memory_space<vmem>>, %arg3: memref<1x128xf32, #tpu.memory_space<vmem>>, %arg4: memref<1x128xf32, #tpu.memory_space<vmem>>, %arg5: memref<1x128xf32, #tpu.memory_space<vmem>>, %arg6: memref<128x128xbf16, #tpu.memory_space<vmem>>) attributes {dimension_semantics = [#tpu.dimension_semantics<parallel>], iteration_bounds = array<i64: 1>, scalar_prefetch = 0 : i64, scratch_operands = 0 : i64, tpu.core_type = #tpu.core_type<tc>, window_params = [{transform_indices = @transform_0, window_bounds = array<i64: 128, 144>}, {pipeline_mode = #tpu.pipeline_mode<synchronous>, transform_indices = @transform_1, window_bounds = array<i64: 144, 128>}, {pipeline_mode = #tpu.pipeline_mode<synchronous>, transform_indices = @transform_2, window_bounds = array<i64: 1, 128>}, {pipeline_mode = #tpu.pipeline_mode<synchronous>, transform_indices = @transform_3, window_bounds = array<i64: 1, 128>}, {pipeline_mode = #tpu.pipeline_mode<synchronous>, transform_indices = @transform_4, window_bounds = array<i64: 1, 128>}, {transform_indices = @transform_5, window_bounds = array<i64: 128, 128>}]} {
    %c0 = arith.constant 0 : index
    %c0_0 = arith.constant 0 : index
    %0 = vector.load %arg1[%c0, %c0_0] : memref<128x144xbf16, #tpu.memory_space<vmem>>, vector<128x144xbf16>
    %c0_1 = arith.constant 0 : index
    %c0_2 = arith.constant 0 : index
    %1 = vector.load %arg2[%c0_1, %c0_2] : memref<144x128xbf16, #tpu.memory_space<vmem>>, vector<144x128xbf16>
    %cst = arith.constant dense<0.000000e+00> : vector<128x128xf32>
    %2 = tpu.matmul %0, %1, %cst {dimension_numbers = #tpu.dot_dimension_numbers<[1], [0], [0], [1], [0, 0, 1, 1], [], []>} : vector<128x144xbf16>, vector<144x128xbf16>, vector<128x128xf32> -> vector<128x128xf32>
    %c0_3 = arith.constant 0 : index
    %c0_4 = arith.constant 0 : index
    %3 = vector.load %arg3[%c0_3, %c0_4] : memref<1x128xf32, #tpu.memory_space<vmem>>, vector<1x128xf32>
    %4 = vector.broadcast %3 : vector<1x128xf32> to vector<128x128xf32>
    %5 = arith.addf %2, %4 : vector<128x128xf32>
    %cst_5 = arith.constant 5.000000e-01 : f32
    %6 = vector.broadcast %cst_5 : f32 to vector<128x128xf32>
    %7 = arith.mulf %6, %5 : vector<128x128xf32>
    %cst_6 = arith.constant 0.707106769 : f32
    %8 = vector.broadcast %cst_6 : f32 to vector<128x128xf32>
    %9 = arith.mulf %5, %8 : vector<128x128xf32>
    %10 = math.erf %9 : vector<128x128xf32>
    %cst_7 = arith.constant 1.000000e+00 : f32
    %11 = vector.broadcast %cst_7 : f32 to vector<128x128xf32>
    %12 = arith.addf %11, %10 : vector<128x128xf32>
    %13 = arith.mulf %7, %12 : vector<128x128xf32>
    %c0_8 = arith.constant 0 : index
    %c0_9 = arith.constant 0 : index
    %14 = vector.load %arg4[%c0_8, %c0_9] : memref<1x128xf32, #tpu.memory_space<vmem>>, vector<1x128xf32>
    %15 = vector.broadcast %14 : vector<1x128xf32> to vector<128x128xf32>
    %16 = arith.mulf %13, %15 : vector<128x128xf32>
    %c0_10 = arith.constant 0 : index
    %c0_11 = arith.constant 0 : index
    %17 = vector.load %arg5[%c0_10, %c0_11] : memref<1x128xf32, #tpu.memory_space<vmem>>, vector<1x128xf32>
    %18 = vector.broadcast %17 : vector<1x128xf32> to vector<128x128xf32>
    %19 = arith.addf %16, %18 : vector<128x128xf32>
    %20 = arith.truncf %19 : vector<128x128xf32> to vector<128x128xbf16>
    %c0_12 = arith.constant 0 : index
    %c0_13 = arith.constant 0 : index
    %21 = vector.load %arg6[%c0_12, %c0_13] : memref<128x128xbf16, #tpu.memory_space<vmem>>, vector<128x128xbf16>
    tpu.vector_store %arg6[%c0_12, %c0_13], %20 {strides = array<i32>} : memref<128x128xbf16, #tpu.memory_space<vmem>>, vector<128x128xbf16>,
    return
  }
  func.func @transform_0(%arg0: i32) -> (i32, i32) {
    %c0_i32 = arith.constant 0 : i32
    %c0_i32_0 = arith.constant 0 : i32
    return %arg0, %c0_i32 : i32, i32
  }
  func.func @transform_1(%arg0: i32) -> (i32, i32) {
    %c0_i32 = arith.constant 0 : i32
    %c0_i32_0 = arith.constant 0 : i32
    %c0_i32_1 = arith.constant 0 : i32
    return %c0_i32, %c0_i32_0 : i32, i32
  }
  func.func @transform_2(%arg0: i32) -> (i32, i32) {
    %c0_i32 = arith.constant 0 : i32
    %c0_i32_0 = arith.constant 0 : i32
    %c0_i32_1 = arith.constant 0 : i32
    return %c0_i32, %c0_i32_0 : i32, i32
  }
  func.func @transform_3(%arg0: i32) -> (i32, i32) {
    %c0_i32 = arith.constant 0 : i32
    %c0_i32_0 = arith.constant 0 : i32
    %c0_i32_1 = arith.constant 0 : i32
    return %c0_i32, %c0_i32_0 : i32, i32
  }
  func.func @transform_4(%arg0: i32) -> (i32, i32) {
    %c0_i32 = arith.constant 0 : i32
    %c0_i32_0 = arith.constant 0 : i32
    %c0_i32_1 = arith.constant 0 : i32
    return %c0_i32, %c0_i32_0 : i32, i32
  }
  func.func @transform_5(%arg0: i32) -> (i32, i32) {
    %c0_i32 = arith.constant 0 : i32
    %c0_i32_0 = arith.constant 0 : i32
    return %arg0, %c0_i32 : i32, i32
  }
}

module attributes {stable_mosaic.version = 11 : i64} {
  func.func @_matmul_gelu_bn_kernel(%arg0: i32, %arg1: memref<32x144xbf16, #tpu.memory_space<vmem>>, %arg2: memref<144x128xbf16, #tpu.memory_space<vmem>>, %arg3: memref<1x128xf32, #tpu.memory_space<vmem>>, %arg4: memref<1x128xf32, #tpu.memory_space<vmem>>, %arg5: memref<1x128xf32, #tpu.memory_space<vmem>>, %arg6: memref<32x128xbf16, #tpu.memory_space<vmem>>) attributes {dimension_semantics = [#tpu.dimension_semantics<parallel>], iteration_bounds = array<i64: 1>, scalar_prefetch = 0 : i64, scratch_operands = 0 : i64, tpu.core_type = #tpu.core_type<tc>, window_params = [{transform_indices = @transform_0, window_bounds = array<i64: 32, 144>}, {pipeline_mode = #tpu.pipeline_mode<synchronous>, transform_indices = @transform_1, window_bounds = array<i64: 144, 128>}, {pipeline_mode = #tpu.pipeline_mode<synchronous>, transform_indices = @transform_2, window_bounds = array<i64: 1, 128>}, {pipeline_mode = #tpu.pipeline_mode<synchronous>, transform_indices = @transform_3, window_bounds = array<i64: 1, 128>}, {pipeline_mode = #tpu.pipeline_mode<synchronous>, transform_indices = @transform_4, window_bounds = array<i64: 1, 128>}, {transform_indices = @transform_5, window_bounds = array<i64: 32, 128>}]} {
    %c0 = arith.constant 0 : index
    %c0_0 = arith.constant 0 : index
    %0 = vector.load %arg1[%c0, %c0_0] : memref<32x144xbf16, #tpu.memory_space<vmem>>, vector<32x144xbf16>
    %c0_1 = arith.constant 0 : index
    %c0_2 = arith.constant 0 : index
    %1 = vector.load %arg2[%c0_1, %c0_2] : memref<144x128xbf16, #tpu.memory_space<vmem>>, vector<144x128xbf16>
    %cst = arith.constant dense<0.000000e+00> : vector<32x128xf32>
    %2 = tpu.matmul %0, %1, %cst {dimension_numbers = #tpu.dot_dimension_numbers<[1], [0], [0], [1], [0, 0, 1, 1], [], []>} : vector<32x144xbf16>, vector<144x128xbf16>, vector<32x128xf32> -> vector<32x128xf32>
    %c0_3 = arith.constant 0 : index
    %c0_4 = arith.constant 0 : index
    %3 = vector.load %arg3[%c0_3, %c0_4] : memref<1x128xf32, #tpu.memory_space<vmem>>, vector<1x128xf32>
    %4 = vector.broadcast %3 : vector<1x128xf32> to vector<32x128xf32>
    %5 = arith.addf %2, %4 : vector<32x128xf32>
    %cst_5 = arith.constant 5.000000e-01 : f32
    %6 = vector.broadcast %cst_5 : f32 to vector<32x128xf32>
    %7 = arith.mulf %6, %5 : vector<32x128xf32>
    %cst_6 = arith.constant 0.707106769 : f32
    %8 = vector.broadcast %cst_6 : f32 to vector<32x128xf32>
    %9 = arith.mulf %5, %8 : vector<32x128xf32>
    %10 = math.erf %9 : vector<32x128xf32>
    %cst_7 = arith.constant 1.000000e+00 : f32
    %11 = vector.broadcast %cst_7 : f32 to vector<32x128xf32>
    %12 = arith.addf %11, %10 : vector<32x128xf32>
    %13 = arith.mulf %7, %12 : vector<32x128xf32>
    %c0_8 = arith.constant 0 : index
    %c0_9 = arith.constant 0 : index
    %14 = vector.load %arg4[%c0_8, %c0_9] : memref<1x128xf32, #tpu.memory_space<vmem>>, vector<1x128xf32>
    %15 = vector.broadcast %14 : vector<1x128xf32> to vector<32x128xf32>
    %16 = arith.mulf %13, %15 : vector<32x128xf32>
    %c0_10 = arith.constant 0 : index
    %c0_11 = arith.constant 0 : index
    %17 = vector.load %arg5[%c0_10, %c0_11] : memref<1x128xf32, #tpu.memory_space<vmem>>, vector<1x128xf32>
    %18 = vector.broadcast %17 : vector<1x128xf32> to vector<32x128xf32>
    %19 = arith.addf %16, %18 : vector<32x128xf32>
    %20 = arith.truncf %19 : vector<32x128xf32> to vector<32x128xbf16>
    %c0_12 = arith.constant 0 : index
    %c0_13 = arith.constant 0 : index
    %21 = vector.load %arg6[%c0_12, %c0_13] : memref<32x128xbf16, #tpu.memory_space<vmem>>, vector<32x128xbf16>
    tpu.vector_store %arg6[%c0_12, %c0_13], %20 {strides = array<i32>} : memref<32x128xbf16, #tpu.memory_space<vmem>>, vector<32x128xbf16>,
    return
  }
  func.func @transform_0(%arg0: i32) -> (i32, i32) {
    %c0_i32 = arith.constant 0 : i32
    %c0_i32_0 = arith.constant 0 : i32
    return %arg0, %c0_i32 : i32, i32
  }
  func.func @transform_1(%arg0: i32) -> (i32, i32) {
    %c0_i32 = arith.constant 0 : i32
    %c0_i32_0 = arith.constant 0 : i32
    %c0_i32_1 = arith.constant 0 : i32
    return %c0_i32, %c0_i32_0 : i32, i32
  }
  func.func @transform_2(%arg0: i32) -> (i32, i32) {
    %c0_i32 = arith.constant 0 : i32
    %c0_i32_0 = arith.constant 0 : i32
    %c0_i32_1 = arith.constant 0 : i32
    return %c0_i32, %c0_i32_0 : i32, i32
  }
  func.func @transform_3(%arg0: i32) -> (i32, i32) {
    %c0_i32 = arith.constant 0 : i32
    %c0_i32_0 = arith.constant 0 : i32
    %c0_i32_1 = arith.constant 0 : i32
    return %c0_i32, %c0_i32_0 : i32, i32
  }
  func.func @transform_4(%arg0: i32) -> (i32, i32) {
    %c0_i32 = arith.constant 0 : i32
    %c0_i32_0 = arith.constant 0 : i32
    %c0_i32_1 = arith.constant 0 : i32
    return %c0_i32, %c0_i32_0 : i32, i32
  }
  func.func @transform_5(%arg0: i32) -> (i32, i32) {
    %c0_i32 = arith.constant 0 : i32
    %c0_i32_0 = arith.constant 0 : i32
    return %arg0, %c0_i32 : i32, i32
  }
}

module attributes {stable_mosaic.version = 11 : i64} {
  func.func @_matmul_gelu_bn_kernel(%arg0: i32, %arg1: memref<32x288xbf16, #tpu.memory_space<vmem>>, %arg2: memref<288x128xbf16, #tpu.memory_space<vmem>>, %arg3: memref<1x128xf32, #tpu.memory_space<vmem>>, %arg4: memref<1x128xf32, #tpu.memory_space<vmem>>, %arg5: memref<1x128xf32, #tpu.memory_space<vmem>>, %arg6: memref<32x128xf32, #tpu.memory_space<vmem>>) attributes {dimension_semantics = [#tpu.dimension_semantics<parallel>], iteration_bounds = array<i64: 1>, scalar_prefetch = 0 : i64, scratch_operands = 0 : i64, tpu.core_type = #tpu.core_type<tc>, window_params = [{transform_indices = @transform_0, window_bounds = array<i64: 32, 288>}, {pipeline_mode = #tpu.pipeline_mode<synchronous>, transform_indices = @transform_1, window_bounds = array<i64: 288, 128>}, {pipeline_mode = #tpu.pipeline_mode<synchronous>, transform_indices = @transform_2, window_bounds = array<i64: 1, 128>}, {pipeline_mode = #tpu.pipeline_mode<synchronous>, transform_indices = @transform_3, window_bounds = array<i64: 1, 128>}, {pipeline_mode = #tpu.pipeline_mode<synchronous>, transform_indices = @transform_4, window_bounds = array<i64: 1, 128>}, {transform_indices = @transform_5, window_bounds = array<i64: 32, 128>}]} {
    %c0 = arith.constant 0 : index
    %c0_0 = arith.constant 0 : index
    %0 = vector.load %arg1[%c0, %c0_0] : memref<32x288xbf16, #tpu.memory_space<vmem>>, vector<32x288xbf16>
    %c0_1 = arith.constant 0 : index
    %c0_2 = arith.constant 0 : index
    %1 = vector.load %arg2[%c0_1, %c0_2] : memref<288x128xbf16, #tpu.memory_space<vmem>>, vector<288x128xbf16>
    %cst = arith.constant dense<0.000000e+00> : vector<32x128xf32>
    %2 = tpu.matmul %0, %1, %cst {dimension_numbers = #tpu.dot_dimension_numbers<[1], [0], [0], [1], [0, 0, 1, 1], [], []>} : vector<32x288xbf16>, vector<288x128xbf16>, vector<32x128xf32> -> vector<32x128xf32>
    %c0_3 = arith.constant 0 : index
    %c0_4 = arith.constant 0 : index
    %3 = vector.load %arg3[%c0_3, %c0_4] : memref<1x128xf32, #tpu.memory_space<vmem>>, vector<1x128xf32>
    %4 = vector.broadcast %3 : vector<1x128xf32> to vector<32x128xf32>
    %5 = arith.addf %2, %4 : vector<32x128xf32>
    %cst_5 = arith.constant 5.000000e-01 : f32
    %6 = vector.broadcast %cst_5 : f32 to vector<32x128xf32>
    %7 = arith.mulf %6, %5 : vector<32x128xf32>
    %cst_6 = arith.constant 0.707106769 : f32
    %8 = vector.broadcast %cst_6 : f32 to vector<32x128xf32>
    %9 = arith.mulf %5, %8 : vector<32x128xf32>
    %10 = math.erf %9 : vector<32x128xf32>
    %cst_7 = arith.constant 1.000000e+00 : f32
    %11 = vector.broadcast %cst_7 : f32 to vector<32x128xf32>
    %12 = arith.addf %11, %10 : vector<32x128xf32>
    %13 = arith.mulf %7, %12 : vector<32x128xf32>
    %c0_8 = arith.constant 0 : index
    %c0_9 = arith.constant 0 : index
    %14 = vector.load %arg4[%c0_8, %c0_9] : memref<1x128xf32, #tpu.memory_space<vmem>>, vector<1x128xf32>
    %15 = vector.broadcast %14 : vector<1x128xf32> to vector<32x128xf32>
    %16 = arith.mulf %13, %15 : vector<32x128xf32>
    %c0_10 = arith.constant 0 : index
    %c0_11 = arith.constant 0 : index
    %17 = vector.load %arg5[%c0_10, %c0_11] : memref<1x128xf32, #tpu.memory_space<vmem>>, vector<1x128xf32>
    %18 = vector.broadcast %17 : vector<1x128xf32> to vector<32x128xf32>
    %19 = arith.addf %16, %18 : vector<32x128xf32>
    %c0_12 = arith.constant 0 : index
    %c0_13 = arith.constant 0 : index
    %20 = vector.load %arg6[%c0_12, %c0_13] : memref<32x128xf32, #tpu.memory_space<vmem>>, vector<32x128xf32>
    tpu.vector_store %arg6[%c0_12, %c0_13], %19 {strides = array<i32>} : memref<32x128xf32, #tpu.memory_space<vmem>>, vector<32x128xf32>,
    return
  }
  func.func @transform_0(%arg0: i32) -> (i32, i32) {
    %c0_i32 = arith.constant 0 : i32
    %c0_i32_0 = arith.constant 0 : i32
    return %arg0, %c0_i32 : i32, i32
  }
  func.func @transform_1(%arg0: i32) -> (i32, i32) {
    %c0_i32 = arith.constant 0 : i32
    %c0_i32_0 = arith.constant 0 : i32
    %c0_i32_1 = arith.constant 0 : i32
    return %c0_i32, %c0_i32_0 : i32, i32
  }
  func.func @transform_2(%arg0: i32) -> (i32, i32) {
    %c0_i32 = arith.constant 0 : i32
    %c0_i32_0 = arith.constant 0 : i32
    %c0_i32_1 = arith.constant 0 : i32
    return %c0_i32, %c0_i32_0 : i32, i32
  }
  func.func @transform_3(%arg0: i32) -> (i32, i32) {
    %c0_i32 = arith.constant 0 : i32
    %c0_i32_0 = arith.constant 0 : i32
    %c0_i32_1 = arith.constant 0 : i32
    return %c0_i32, %c0_i32_0 : i32, i32
  }
  func.func @transform_4(%arg0: i32) -> (i32, i32) {
    %c0_i32 = arith.constant 0 : i32
    %c0_i32_0 = arith.constant 0 : i32
    %c0_i32_1 = arith.constant 0 : i32
    return %c0_i32, %c0_i32_0 : i32, i32
  }
  func.func @transform_5(%arg0: i32) -> (i32, i32) {
    %c0_i32 = arith.constant 0 : i32
    %c0_i32_0 = arith.constant 0 : i32
    return %arg0, %c0_i32 : i32, i32
  }
}

</mosaic_0001>

<llo_original>
// kernel: patch_embed.4
$region0: #{patch_embed.4}
  #allocation0 [shape = 'u32[]', space=smem, size = 0x4, offset = 0x4, fixed_abs, tag = 'smem constant byte address 0x4 - core index']
  #allocation1 [shape = 'u32[144,128]{1,0:T(1,128)}', space=vmem, size = 0x12000, scoped, tag = 'internal scratch']
  %s0 = inlined_call_operand.vmem [shape: bf16[128,36], index: 0, kind: input, shape index: {}]
  %s1 = inlined_call_operand.vmem [shape: bf16[36,128], index: 1, kind: input, shape index: {}]
  %s2 = inlined_call_operand.vmem [shape: f32[1,128], index: 2, kind: input, shape index: {}]
  %s3 = inlined_call_operand.vmem [shape: f32[1,128], index: 3, kind: input, shape index: {}]
  %s4 = inlined_call_operand.vmem [shape: f32[1,128], index: 4, kind: input, shape index: {}]
  %s5 = inlined_call_operand.vmem [shape: bf16[128,128], index: 5, kind: output, shape index: {}]
  %s6 = sld [smem:[#allocation0]]
  $region30: #{patch_embed.4} parent=0
    _
  %s8 = ssub.s32 1, %s6
  %s9 = scalar_select 0, %s8, %s6
  // Predicated region
  $region2: #{patch_embed.4} parent=0 // pred_check
    _
  $region3: #{patch_embed.4} parent=0 // pred_check_branch
    %11 = sbr.rel (0) target = $region5
  $region4: #{patch_embed.4} parent=0 // pred_region
    _
  $region5: #{patch_embed.4} parent=0 // pred_fallthru
    _
  // Predicated region
  $region6: #{patch_embed.4} parent=0 // pred_check
    _
  $region7: #{patch_embed.4} parent=0 // pred_check_branch
    %13 = sbr.rel (0) target = $region9
  $region8: #{patch_embed.4} parent=0 // pred_region
    _
  $region9: #{patch_embed.4} parent=0 // pred_fallthru
    _
  // Predicated region
  $region10: #{patch_embed.4} parent=0 // pred_check
    _
  $region11: #{patch_embed.4} parent=0 // pred_check_branch
    %15 = sbr.rel (0) target = $region13
  $region12: #{patch_embed.4} parent=0 // pred_region
    _
  $region13: #{patch_embed.4} parent=0 // pred_fallthru
    _
  // Predicated region
  $region14: #{patch_embed.4} parent=0 // pred_check
    _
  $region15: #{patch_embed.4} parent=0 // pred_check_branch
    %17 = sbr.rel (0) target = $region17
  $region16: #{patch_embed.4} parent=0 // pred_region
    _
  $region17: #{patch_embed.4} parent=0 // pred_fallthru
    _
  // Predicated region
  $region18: #{patch_embed.4} parent=0 // pred_check
    _
  $region19: #{patch_embed.4} parent=0 // pred_check_branch
    %19 = sbr.rel (0) target = $region21
  $region20: #{patch_embed.4} parent=0 // pred_region
    _
  $region21: #{patch_embed.4} parent=0 // pred_fallthru
    _
  %v21 = vld [vmem:[%s0] sm:$0xf]
  %v22 = vld [vmem:[%s0 + $0x4] sm:$0xf]
  %v23 = vld [vmem:[%s0 + $0x8] sm:$0xf]
  %v24 = vld [vmem:[%s0 + $0xc] sm:$0xf]
  %v25 = vld [vmem:[%s0 + $0x10] sm:$0xf]
  %v26 = vld [vmem:[%s0 + $0x14] sm:$0xf]
  %v27 = vld [vmem:[%s0 + $0x18] sm:$0xf]
  %v28 = vld [vmem:[%s0 + $0x1c] sm:$0xf]
  %v29 = vld [vmem:[%s0 + $0x20] sm:$0xf]
  %v30 = vld [vmem:[%s0 + $0x24] sm:$0xf]
  %v31 = vld [vmem:[%s0 + $0x28] sm:$0xf]
  %v32 = vld [vmem:[%s0 + $0x2c] sm:$0xf]
  %v33 = vld [vmem:[%s0 + $0x30] sm:$0xf]
  %v34 = vld [vmem:[%s0 + $0x34] sm:$0xf]
  %v35 = vld [vmem:[%s0 + $0x38] sm:$0xf]
  %v36 = vld [vmem:[%s0 + $0x3c] sm:$0xf]
  %v37 = vld [vmem:[%s1] sm:$0xf]
  %v38 = vld [vmem:[%s1 + $0x4] sm:$0xf]
  %v39 = vld [vmem:[%s1 + $0x8] sm:$0xf]
  %v40 = vld [vmem:[%s1 + $0xc] sm:$0xf]
  %v41 = vld [vmem:[%s1 + $0x10] sm:$0x3]
  %v42 = vld [vmem:[%s2] sm:$0x1]
  %v44 = vlaneseq
  %v45 = vshrl.u32 %v44, 7
  %v46 = vsub.s32 0, %v45
  %v47 = vrot.slane %v42, %v46
  %v65 = vunpack.c.l.b16 %v21
  %v66 = vunpack.c.l.b16 %v22
  %v67 = vunpack.c.l.b16 %v23
  %v68 = vunpack.c.l.b16 %v24
  %v69 = vunpack.c.l.b16 %v25
  %v70 = vunpack.c.l.b16 %v26
  %v71 = vunpack.c.l.b16 %v27
  %v72 = vunpack.c.l.b16 %v28
  %v73 = vunpack.c.l.b16 %v29
  %v74 = vunpack.c.l.b16 %v30
  %v75 = vunpack.c.l.b16 %v31
  %v76 = vunpack.c.l.b16 %v32
  %v77 = vunpack.c.l.b16 %v33
  %v78 = vunpack.c.l.b16 %v34
  %v79 = vunpack.c.l.b16 %v35
  %v80 = vunpack.c.l.b16 %v36
  %v81 = vpack.c.b16 %v66, %v65
  %v82 = vpack.c.b16 %v68, %v67
  %v83 = vpack.c.b16 %v70, %v69
  %v84 = vpack.c.b16 %v72, %v71
  %v85 = vpack.c.b16 %v74, %v73
  %v86 = vpack.c.b16 %v76, %v75
  %v87 = vpack.c.b16 %v78, %v77
  %v88 = vpack.c.b16 %v80, %v79
  %v94 = vunpack.c.l.b16 %v37
  %v95 = vunpack.c.l.b16 %v38
  %v96 = vunpack.c.l.b16 %v39
  %v97 = vunpack.c.l.b16 %v40
  %v98 = vunpack.c.l.b16 %v41
  %v99 = vpack.c.b16 %v95, %v94
  %v100 = vpack.c.b16 %v97, %v96
  %v101 = vpack.c.b16 %v98, %v98
  %vm104 = vcmask 293888
  %v106 = vsel %vm104, %v81, 0
  %v109 = vsel %vm104, %v82, 0
  %v112 = vsel %vm104, %v83, 0
  %v115 = vsel %vm104, %v84, 0
  %v118 = vsel %vm104, %v85, 0
  %v121 = vsel %vm104, %v86, 0
  %v124 = vsel %vm104, %v87, 0
  %v127 = vsel %vm104, %v88, 0
  %vm129 = vcmask 1041408
  %v131 = vsel %vm129, %v101, 0
  %133 = vmatprep.subr.bf16.mxu0 0
  %134 = vmatpush1.bf16.msra.mxu0 %v99
  %135 = vmatprep.subr.bf16.mxu0 0
  %136 = vmatpush1.bf16.msra.mxu0 %v100
  %137 = vmatprep.subr.bf16.mxu0 0
  %138 = vmatpush1.bf16.msra.mxu0 %v131
  %139 = vmatprep.subr.bf16.mxu0 0
  %140 = vmatpush1.bf16.msra.mxu0 0
  %141 = vmatprep.subr.bf16.mxu0 0
  %142 = vmatpush1.bf16.msra.mxu0 0
  %143 = vmatprep.subr.bf16.mxu0 0
  %144 = vmatpush1.bf16.msra.mxu0 0
  %145 = vmatprep.subr.bf16.mxu0 0
  %146 = vmatpush1.bf16.msra.mxu0 0
  %147 = vmatprep.subr.bf16.mxu0 0
  %148 = vmatpush1.bf16.msra.mxu0 0
  %149 = vmatprep.subr.bf16.mxu0 0
  %150 = vmatpush1.bf16.msra.mxu0 0
  %151 = vmatprep.subr.bf16.mxu0 0
  %152 = vmatpush1.bf16.msra.mxu0 0
  %153 = vmatprep.subr.bf16.mxu0 0
  %154 = vmatpush1.bf16.msra.mxu0 0
  %155 = vmatprep.subr.bf16.mxu0 0
  %156 = vmatpush1.bf16.msra.mxu0 0
  %157 = vmatprep.subr.bf16.mxu0 0
  %158 = vmatpush1.bf16.msra.mxu0 0
  %159 = vmatprep.subr.bf16.mxu0 0
  %160 = vmatpush1.bf16.msra.mxu0 0
  %161 = vmatprep.subr.bf16.mxu0 0
  %162 = vmatpush1.bf16.msra.mxu0 0
  %163 = vmatprep.subr.bf16.mxu0 0
  %164 = vmatpush1.bf16.msra.mxu0 0
  %165 = vmatprep.mubr.bf16.mxu0 0
  %166 = vmatmul.mubr.bf16.gmra.mrb[0].mxu0 %v106
  %v167 = vpop.f32.mrb[0].mxu0
  %v168 = vadd.f32 %v47, %v167
  %v169 = vpop.f32.mrb[0].mxu0
  %v170 = vpop.f32.mrb[0].mxu0
  %v171 = vadd.f32 %v47, %v170
  %v172 = vpop.f32.mrb[0].mxu0
  %173 = vmatprep.mubr.bf16.mxu0 0
  %174 = vmatmul.mubr.bf16.gmra.mrb[0].mxu0 %v109
  %v175 = vpop.f32.mrb[0].mxu0
  %v176 = vadd.f32 %v47, %v175
  %v177 = vpop.f32.mrb[0].mxu0
  %v178 = vpop.f32.mrb[0].mxu0
  %v179 = vadd.f32 %v47, %v178
  %v180 = vpop.f32.mrb[0].mxu0
  %181 = vmatprep.mubr.bf16.mxu0 0
  %182 = vmatmul.mubr.bf16.gmra.mrb[0].mxu0 %v112
  %v183 = vpop.f32.mrb[0].mxu0
  %v184 = vadd.f32 %v47, %v183
  %v185 = vpop.f32.mrb[0].mxu0
  %v186 = vpop.f32.mrb[0].mxu0
  %v187 = vadd.f32 %v47, %v186
  %v188 = vpop.f32.mrb[0].mxu0
  %189 = vmatprep.mubr.bf16.mxu0 0
  %190 = vmatmul.mubr.bf16.gmra.mrb[0].mxu0 %v115
  %v191 = vpop.f32.mrb[0].mxu0
  %v192 = vadd.f32 %v47, %v191
  %v193 = vpop.f32.mrb[0].mxu0
  %v194 = vpop.f32.mrb[0].mxu0
  %v195 = vadd.f32 %v47, %v194
  %v196 = vpop.f32.mrb[0].mxu0
  %197 = vmatprep.mubr.bf16.mxu0 0
  %198 = vmatmul.mubr.bf16.gmra.mrb[0].mxu0 %v118
  %v199 = vpop.f32.mrb[0].mxu0
  %v200 = vadd.f32 %v47, %v199
  %v201 = vpop.f32.mrb[0].mxu0
  %v202 = vpop.f32.mrb[0].mxu0
  %v203 = vadd.f32 %v47, %v202
  %v204 = vpop.f32.mrb[0].mxu0
  %205 = vmatprep.mubr.bf16.mxu0 0
  %206 = vmatmul.mubr.bf16.gmra.mrb[0].mxu0 %v121
  %v207 = vpop.f32.mrb[0].mxu0
  %v208 = vadd.f32 %v47, %v207
  %v209 = vpop.f32.mrb[0].mxu0
  %v210 = vpop.f32.mrb[0].mxu0
  %v211 = vadd.f32 %v47, %v210
  %v212 = vpop.f32.mrb[0].mxu0
  %213 = vmatprep.mubr.bf16.mxu0 0
  %214 = vmatmul.mubr.bf16.gmra.mrb[0].mxu0 %v124
  %v215 = vpop.f32.mrb[0].mxu0
  %v216 = vadd.f32 %v47, %v215
  %v217 = vpop.f32.mrb[0].mxu0
  %v218 = vpop.f32.mrb[0].mxu0
  %v219 = vadd.f32 %v47, %v218
  %v220 = vpop.f32.mrb[0].mxu0
  %221 = vmatprep.mubr.bf16.mxu0 0
  %222 = vmatmul.mubr.bf16.gmra.mrb[0].mxu0 %v127
  %v223 = vpop.f32.mrb[0].mxu0
  %v224 = vadd.f32 %v47, %v223
  %v225 = vpop.f32.mrb[0].mxu0
  %v226 = vpop.f32.mrb[0].mxu0
  %v227 = vadd.f32 %v47, %v226
  %v228 = vpop.f32.mrb[0].mxu0
  %229 = vdwg.mxu0
  %v230 = vmul.f32 %v168, 0.5
  %v231 = vmul.f32 %v171, 0.5
  %v232 = vmul.f32 %v176, 0.5
  %v233 = vmul.f32 %v179, 0.5
  %v234 = vmul.f32 %v184, 0.5
  %v235 = vmul.f32 %v187, 0.5
  %v236 = vmul.f32 %v192, 0.5
  %v237 = vmul.f32 %v195, 0.5
  %v238 = vmul.f32 %v200, 0.5
  %v239 = vmul.f32 %v203, 0.5
  %v240 = vmul.f32 %v208, 0.5
  %v241 = vmul.f32 %v211, 0.5
  %v242 = vmul.f32 %v216, 0.5
  %v243 = vmul.f32 %v219, 0.5
  %v244 = vmul.f32 %v224, 0.5
  %v245 = vmul.f32 %v227, 0.5
  %v246 = vmul.f32 %v168, 0.70710677
  %v247 = vmul.f32 %v171, 0.70710677
  %v248 = vmul.f32 %v176, 0.70710677
  %v249 = vmul.f32 %v179, 0.70710677
  %v250 = vmul.f32 %v184, 0.70710677
  %v251 = vmul.f32 %v187, 0.70710677
  %v252 = vmul.f32 %v192, 0.70710677
  %v253 = vmul.f32 %v195, 0.70710677
  %v254 = vmul.f32 %v200, 0.70710677
  %v255 = vmul.f32 %v203, 0.70710677
  %v256 = vmul.f32 %v208, 0.70710677
  %v257 = vmul.f32 %v211, 0.70710677
  %v258 = vmul.f32 %v216, 0.70710677
  %v259 = vmul.f32 %v219, 0.70710677
  %v260 = vmul.f32 %v224, 0.70710677
  %v261 = vmul.f32 %v227, 0.70710677
  %v262 = verf.f32.pop %v246
  %v263 = verf.f32.pop %v247
  %v264 = verf.f32.pop %v248
  %v265 = verf.f32.pop %v249
  %v266 = verf.f32.pop %v250
  %v267 = verf.f32.pop %v251
  %v268 = verf.f32.pop %v252
  %v269 = verf.f32.pop %v253
  %v270 = verf.f32.pop %v254
  %v271 = verf.f32.pop %v255
  %v272 = verf.f32.pop %v256
  %v273 = verf.f32.pop %v257
  %v274 = verf.f32.pop %v258
  %v275 = verf.f32.pop %v259
  %v276 = verf.f32.pop %v260
  %v277 = verf.f32.pop %v261
  %v278 = vadd.f32 %v262, 1.0
  %v279 = vadd.f32 %v263, 1.0
  %v280 = vadd.f32 %v264, 1.0
  %v281 = vadd.f32 %v265, 1.0
  %v282 = vadd.f32 %v266, 1.0
  %v283 = vadd.f32 %v267, 1.0
  %v284 = vadd.f32 %v268, 1.0
  %v285 = vadd.f32 %v269, 1.0
  %v286 = vadd.f32 %v270, 1.0
  %v287 = vadd.f32 %v271, 1.0
  %v288 = vadd.f32 %v272, 1.0
  %v289 = vadd.f32 %v273, 1.0
  %v290 = vadd.f32 %v274, 1.0
  %v291 = vadd.f32 %v275, 1.0
  %v292 = vadd.f32 %v276, 1.0
  %v293 = vadd.f32 %v277, 1.0
  %v294 = vmul.f32 %v230, %v278
  %v295 = vmul.f32 %v231, %v279
  %v296 = vmul.f32 %v232, %v280
  %v297 = vmul.f32 %v233, %v281
  %v298 = vmul.f32 %v234, %v282
  %v299 = vmul.f32 %v235, %v283
  %v300 = vmul.f32 %v236, %v284
  %v301 = vmul.f32 %v237, %v285
  %v302 = vmul.f32 %v238, %v286
  %v303 = vmul.f32 %v239, %v287
  %v304 = vmul.f32 %v240, %v288
  %v305 = vmul.f32 %v241, %v289
  %v306 = vmul.f32 %v242, %v290
  %v307 = vmul.f32 %v243, %v291
  %v308 = vmul.f32 %v244, %v292
  %v309 = vmul.f32 %v245, %v293
  %v310 = vld [vmem:[%s3] sm:$0x1]
  %v312 = vlaneseq
  %v313 = vshrl.u32 %v312, 7
  %v314 = vsub.s32 0, %v313
  %v315 = vrot.slane %v310, %v314
  %v317 = vmul.f32 %v294, %v315
  %v318 = vmul.f32 %v295, %v315
  %v319 = vmul.f32 %v296, %v315
  %v320 = vmul.f32 %v297, %v315
  %v321 = vmul.f32 %v298, %v315
  %v322 = vmul.f32 %v299, %v315
  %v323 = vmul.f32 %v300, %v315
  %v324 = vmul.f32 %v301, %v315
  %v325 = vmul.f32 %v302, %v315
  %v326 = vmul.f32 %v303, %v315
  %v327 = vmul.f32 %v304, %v315
  %v328 = vmul.f32 %v305, %v315
  %v329 = vmul.f32 %v306, %v315
  %v330 = vmul.f32 %v307, %v315
  %v331 = vmul.f32 %v308, %v315
  %v332 = vmul.f32 %v309, %v315
  %v333 = vld [vmem:[%s4] sm:$0x1]
  %v335 = vlaneseq
  %v336 = vshrl.u32 %v335, 7
  %v337 = vsub.s32 0, %v336
  %v338 = vrot.slane %v333, %v337
  %v340 = vadd.f32 %v317, %v338
  %v341 = vadd.f32 %v318, %v338
  %v342 = vadd.f32 %v319, %v338
  %v343 = vadd.f32 %v320, %v338
  %v344 = vadd.f32 %v321, %v338
  %v345 = vadd.f32 %v322, %v338
  %v346 = vadd.f32 %v323, %v338
  %v347 = vadd.f32 %v324, %v338
  %v348 = vadd.f32 %v325, %v338
  %v349 = vadd.f32 %v326, %v338
  %v350 = vadd.f32 %v327, %v338
  %v351 = vadd.f32 %v328, %v338
  %v352 = vadd.f32 %v329, %v338
  %v353 = vadd.f32 %v330, %v338
  %v354 = vadd.f32 %v331, %v338
  %v355 = vadd.f32 %v332, %v338
  %v356 = vpack.c.bf16 %v341, %v340
  %v357 = vpack.c.bf16 %v343, %v342
  %v358 = vpack.c.bf16 %v345, %v344
  %v359 = vpack.c.bf16 %v347, %v346
  %v360 = vpack.c.bf16 %v349, %v348
  %v361 = vpack.c.bf16 %v351, %v350
  %v362 = vpack.c.bf16 %v353, %v352
  %v363 = vpack.c.bf16 %v355, %v354
  %v372 = vunpack.c.l.b16 %v356
  %v373 = vunpack.c.h.b16 %v356
  %v374 = vunpack.c.l.b16 %v357
  %v375 = vunpack.c.h.b16 %v357
  %v376 = vunpack.c.l.b16 %v358
  %v377 = vunpack.c.h.b16 %v358
  %v378 = vunpack.c.l.b16 %v359
  %v379 = vunpack.c.h.b16 %v359
  %v380 = vunpack.c.l.b16 %v360
  %v381 = vunpack.c.h.b16 %v360
  %v382 = vunpack.c.l.b16 %v361
  %v383 = vunpack.c.h.b16 %v361
  %v384 = vunpack.c.l.b16 %v362
  %v385 = vunpack.c.h.b16 %v362
  %v386 = vunpack.c.l.b16 %v363
  %v387 = vunpack.c.h.b16 %v363
  %v388 = vpack.c.b16 %v372, %v372
  %v389 = vpack.c.b16 %v373, %v373
  %v390 = vpack.c.b16 %v374, %v374
  %v391 = vpack.c.b16 %v375, %v375
  %v392 = vpack.c.b16 %v376, %v376
  %v393 = vpack.c.b16 %v377, %v377
  %v394 = vpack.c.b16 %v378, %v378
  %v395 = vpack.c.b16 %v379, %v379
  %v396 = vpack.c.b16 %v380, %v380
  %v397 = vpack.c.b16 %v381, %v381
  %v398 = vpack.c.b16 %v382, %v382
  %v399 = vpack.c.b16 %v383, %v383
  %v400 = vpack.c.b16 %v384, %v384
  %v401 = vpack.c.b16 %v385, %v385
  %v402 = vpack.c.b16 %v386, %v386
  %v403 = vpack.c.b16 %v387, %v387
  %420 = vst [vmem:[%s5] sm:$0xf] %v388
  %421 = vst [vmem:[%s5 + $0x4] sm:$0xf] %v389
  %422 = vst [vmem:[%s5 + $0x8] sm:$0xf] %v390
  %423 = vst [vmem:[%s5 + $0xc] sm:$0xf] %v391
  %424 = vst [vmem:[%s5 + $0x10] sm:$0xf] %v392
  %425 = vst [vmem:[%s5 + $0x14] sm:$0xf] %v393
  %426 = vst [vmem:[%s5 + $0x18] sm:$0xf] %v394
  %427 = vst [vmem:[%s5 + $0x1c] sm:$0xf] %v395
  %428 = vst [vmem:[%s5 + $0x20] sm:$0xf] %v396
  %429 = vst [vmem:[%s5 + $0x24] sm:$0xf] %v397
  %430 = vst [vmem:[%s5 + $0x28] sm:$0xf] %v398
  %431 = vst [vmem:[%s5 + $0x2c] sm:$0xf] %v399
  %432 = vst [vmem:[%s5 + $0x30] sm:$0xf] %v400
  %433 = vst [vmem:[%s5 + $0x34] sm:$0xf] %v401
  %434 = vst [vmem:[%s5 + $0x38] sm:$0xf] %v402
  %435 = vst [vmem:[%s5 + $0x3c] sm:$0xf] %v403
  // Predicated region
  $region22: #{patch_embed.4} parent=0 // pred_check
    _
  $region23: #{patch_embed.4} parent=0 // pred_check_branch
    %437 = sbr.rel (0) target = $region25
  $region24: #{patch_embed.4} parent=0 // pred_region
    _
  $region25: #{patch_embed.4} parent=0 // pred_fallthru
    _
  // Predicated region
  $region26: #{patch_embed.4} parent=0 // pred_check
    _
  $region27: #{patch_embed.4} parent=0 // pred_check_branch
    %439 = sbr.rel (0) target = $region29
  $region28: #{patch_embed.4} parent=0 // pred_region
    _
  $region29: #{patch_embed.4} parent=0 // pred_fallthru
    _

// kernel: patch_embed.5
$region0: #{patch_embed.5}
  #allocation0 [shape = 'u32[]', space=smem, size = 0x4, offset = 0x4, fixed_abs, tag = 'smem constant byte address 0x4 - core index']
  #allocation1 [shape = 'u32[144,128]{1,0:T(1,128)}', space=vmem, size = 0x12000, scoped, tag = 'internal scratch']
  %s0 = inlined_call_operand.vmem [shape: bf16[128,144], index: 0, kind: input, shape index: {}]
  %s1 = inlined_call_operand.vmem [shape: bf16[144,128], index: 1, kind: input, shape index: {}]
  %s2 = inlined_call_operand.vmem [shape: f32[1,128], index: 2, kind: input, shape index: {}]
  %s3 = inlined_call_operand.vmem [shape: f32[1,128], index: 3, kind: input, shape index: {}]
  %s4 = inlined_call_operand.vmem [shape: f32[1,128], index: 4, kind: input, shape index: {}]
  %s5 = inlined_call_operand.vmem [shape: bf16[128,128], index: 5, kind: output, shape index: {}]
  %s6 = sld [smem:[#allocation0]]
  $region30: #{patch_embed.5} parent=0
    _
  %s8 = ssub.s32 1, %s6
  %s9 = scalar_select 0, %s8, %s6
  // Predicated region
  $region2: #{patch_embed.5} parent=0 // pred_check
    _
  $region3: #{patch_embed.5} parent=0 // pred_check_branch
    %11 = sbr.rel (0) target = $region5
  $region4: #{patch_embed.5} parent=0 // pred_region
    _
  $region5: #{patch_embed.5} parent=0 // pred_fallthru
    _
  // Predicated region
  $region6: #{patch_embed.5} parent=0 // pred_check
    _
  $region7: #{patch_embed.5} parent=0 // pred_check_branch
    %13 = sbr.rel (0) target = $region9
  $region8: #{patch_embed.5} parent=0 // pred_region
    _
  $region9: #{patch_embed.5} parent=0 // pred_fallthru
    _
  // Predicated region
  $region10: #{patch_embed.5} parent=0 // pred_check
    _
  $region11: #{patch_embed.5} parent=0 // pred_check_branch
    %15 = sbr.rel (0) target = $region13
  $region12: #{patch_embed.5} parent=0 // pred_region
    _
  $region13: #{patch_embed.5} parent=0 // pred_fallthru
    _
  // Predicated region
  $region14: #{patch_embed.5} parent=0 // pred_check
    _
  $region15: #{patch_embed.5} parent=0 // pred_check_branch
    %17 = sbr.rel (0) target = $region17
  $region16: #{patch_embed.5} parent=0 // pred_region
    _
  $region17: #{patch_embed.5} parent=0 // pred_fallthru
    _
  // Predicated region
  $region18: #{patch_embed.5} parent=0 // pred_check
    _
  $region19: #{patch_embed.5} parent=0 // pred_check_branch
    %19 = sbr.rel (0) target = $region21
  $region20: #{patch_embed.5} parent=0 // pred_region
    _
  $region21: #{patch_embed.5} parent=0 // pred_fallthru
    _
  %v21 = vld [vmem:[%s0] sm:$0xff]
  %v22 = vld [vmem:[%s0 + $0x8] sm:$0xff]
  %v23 = vld [vmem:[%s0 + $0x10] sm:$0xff]
  %v24 = vld [vmem:[%s0 + $0x18] sm:$0xff]
  %v25 = vld [vmem:[%s0 + $0x20] sm:$0xff]
  %v26 = vld [vmem:[%s0 + $0x28] sm:$0xff]
  %v27 = vld [vmem:[%s0 + $0x30] sm:$0xff]
  %v28 = vld [vmem:[%s0 + $0x38] sm:$0xff]
  %v29 = vld [vmem:[%s0 + $0x40] sm:$0xff]
  %v30 = vld [vmem:[%s0 + $0x48] sm:$0xff]
  %v31 = vld [vmem:[%s0 + $0x50] sm:$0xff]
  %v32 = vld [vmem:[%s0 + $0x58] sm:$0xff]
  %v33 = vld [vmem:[%s0 + $0x60] sm:$0xff]
  %v34 = vld [vmem:[%s0 + $0x68] sm:$0xff]
  %v35 = vld [vmem:[%s0 + $0x70] sm:$0xff]
  %v36 = vld [vmem:[%s0 + $0x78] sm:$0xff]
  %v37 = vld [vmem:[%s1] sm:$0xf]
  %v38 = vld [vmem:[%s1 + $0x4] sm:$0xf]
  %v39 = vld [vmem:[%s1 + $0x8] sm:$0xf]
  %v40 = vld [vmem:[%s1 + $0xc] sm:$0xf]
  %v41 = vld [vmem:[%s1 + $0x10] sm:$0xf]
  %v42 = vld [vmem:[%s1 + $0x14] sm:$0xf]
  %v43 = vld [vmem:[%s1 + $0x18] sm:$0xf]
  %v44 = vld [vmem:[%s1 + $0x1c] sm:$0xf]
  %v45 = vld [vmem:[%s1 + $0x20] sm:$0xf]
  %v46 = vld [vmem:[%s1 + $0x24] sm:$0xf]
  %v47 = vld [vmem:[%s1 + $0x28] sm:$0xf]
  %v48 = vld [vmem:[%s1 + $0x2c] sm:$0xf]
  %v49 = vld [vmem:[%s1 + $0x30] sm:$0xf]
  %v50 = vld [vmem:[%s1 + $0x34] sm:$0xf]
  %v51 = vld [vmem:[%s1 + $0x38] sm:$0xf]
  %v52 = vld [vmem:[%s1 + $0x3c] sm:$0xf]
  %v53 = vld [vmem:[%s1 + $0x40] sm:$0xf]
  %v54 = vld [vmem:[%s1 + $0x44] sm:$0xf]
  %v55 = vld [vmem:[%s2] sm:$0x1]
  %v57 = vlaneseq
  %v58 = vshrl.u32 %v57, 7
  %v59 = vsub.s32 0, %v58
  %v60 = vrot.slane %v55, %v59
  %v78 = vunpack.c.l.b16 %v21
  %v79 = vunpack.c.h.b16 %v21
  %v80 = vunpack.c.l.b16 %v22
  %v81 = vunpack.c.h.b16 %v22
  %v82 = vunpack.c.l.b16 %v23
  %v83 = vunpack.c.h.b16 %v23
  %v84 = vunpack.c.l.b16 %v24
  %v85 = vunpack.c.h.b16 %v24
  %v86 = vunpack.c.l.b16 %v25
  %v87 = vunpack.c.h.b16 %v25
  %v88 = vunpack.c.l.b16 %v26
  %v89 = vunpack.c.h.b16 %v26
  %v90 = vunpack.c.l.b16 %v27
  %v91 = vunpack.c.h.b16 %v27
  %v92 = vunpack.c.l.b16 %v28
  %v93 = vunpack.c.h.b16 %v28
  %v94 = vunpack.c.l.b16 %v29
  %v95 = vunpack.c.h.b16 %v29
  %v96 = vunpack.c.l.b16 %v30
  %v97 = vunpack.c.h.b16 %v30
  %v98 = vunpack.c.l.b16 %v31
  %v99 = vunpack.c.h.b16 %v31
  %v100 = vunpack.c.l.b16 %v32
  %v101 = vunpack.c.h.b16 %v32
  %v102 = vunpack.c.l.b16 %v33
  %v103 = vunpack.c.h.b16 %v33
  %v104 = vunpack.c.l.b16 %v34
  %v105 = vunpack.c.h.b16 %v34
  %v106 = vunpack.c.l.b16 %v35
  %v107 = vunpack.c.h.b16 %v35
  %v108 = vunpack.c.l.b16 %v36
  %v109 = vunpack.c.h.b16 %v36
  %v110 = vpack.c.b16 %v80, %v78
  %v111 = vpack.c.b16 %v81, %v79
  %v112 = vpack.c.b16 %v84, %v82
  %v113 = vpack.c.b16 %v85, %v83
  %v114 = vpack.c.b16 %v88, %v86
  %v115 = vpack.c.b16 %v89, %v87
  %v116 = vpack.c.b16 %v92, %v90
  %v117 = vpack.c.b16 %v93, %v91
  %v118 = vpack.c.b16 %v96, %v94
  %v119 = vpack.c.b16 %v97, %v95
  %v120 = vpack.c.b16 %v100, %v98
  %v121 = vpack.c.b16 %v101, %v99
  %v122 = vpack.c.b16 %v104, %v102
  %v123 = vpack.c.b16 %v105, %v103
  %v124 = vpack.c.b16 %v108, %v106
  %v125 = vpack.c.b16 %v109, %v107
  %v152 = vunpack.c.l.b16 %v37
  %v153 = vunpack.c.l.b16 %v38
  %v154 = vunpack.c.l.b16 %v39
  %v155 = vunpack.c.l.b16 %v40
  %v156 = vunpack.c.l.b16 %v41
  %v157 = vunpack.c.l.b16 %v42
  %v158 = vunpack.c.l.b16 %v43
  %v159 = vunpack.c.l.b16 %v44
  %v160 = vunpack.c.l.b16 %v45
  %v161 = vunpack.c.l.b16 %v46
  %v162 = vunpack.c.l.b16 %v47
  %v163 = vunpack.c.l.b16 %v48
  %v164 = vunpack.c.l.b16 %v49
  %v165 = vunpack.c.l.b16 %v50
  %v166 = vunpack.c.l.b16 %v51
  %v167 = vunpack.c.l.b16 %v52
  %v168 = vunpack.c.l.b16 %v53
  %v169 = vunpack.c.l.b16 %v54
  %v170 = vpack.c.b16 %v153, %v152
  %v171 = vpack.c.b16 %v155, %v154
  %v172 = vpack.c.b16 %v157, %v156
  %v173 = vpack.c.b16 %v159, %v158
  %v174 = vpack.c.b16 %v161, %v160
  %v175 = vpack.c.b16 %v163, %v162
  %v176 = vpack.c.b16 %v165, %v164
  %v177 = vpack.c.b16 %v167, %v166
  %v178 = vpack.c.b16 %v169, %v168
  %vm188 = vcmask 130048
  %v190 = vsel %vm188, %v111, 0
  %v193 = vsel %vm188, %v113, 0
  %v196 = vsel %vm188, %v115, 0
  %v199 = vsel %vm188, %v117, 0
  %v202 = vsel %vm188, %v119, 0
  %v205 = vsel %vm188, %v121, 0
  %v208 = vsel %vm188, %v123, 0
  %v211 = vsel %vm188, %v125, 0
  %213 = vmatprep.subr.bf16.mxu0 0
  %214 = vmatpush1.bf16.msra.mxu0 %v170
  %215 = vmatprep.subr.bf16.mxu0 0
  %216 = vmatpush1.bf16.msra.mxu0 %v171
  %217 = vmatprep.subr.bf16.mxu0 0
  %218 = vmatpush1.bf16.msra.mxu0 %v172
  %219 = vmatprep.subr.bf16.mxu0 0
  %220 = vmatpush1.bf16.msra.mxu0 %v173
  %221 = vmatprep.subr.bf16.mxu0 0
  %222 = vmatpush1.bf16.msra.mxu0 %v174
  %223 = vmatprep.subr.bf16.mxu0 0
  %224 = vmatpush1.bf16.msra.mxu0 %v175
  %225 = vmatprep.subr.bf16.mxu0 0
  %226 = vmatpush1.bf16.msra.mxu0 %v176
  %227 = vmatprep.subr.bf16.mxu0 0
  %228 = vmatpush1.bf16.msra.mxu0 %v177
  %229 = vmatprep.subr.bf16.mxu0 0
  %230 = vmatpush1.bf16.msra.mxu0 %v178
  %231 = vmatprep.subr.bf16.mxu0 0
  %232 = vmatpush1.bf16.msra.mxu0 0
  %233 = vmatprep.subr.bf16.mxu0 0
  %234 = vmatpush1.bf16.msra.mxu0 0
  %235 = vmatprep.subr.bf16.mxu0 0
  %236 = vmatpush1.bf16.msra.mxu0 0
  %237 = vmatprep.subr.bf16.mxu0 0
  %238 = vmatpush1.bf16.msra.mxu0 0
  %239 = vmatprep.subr.bf16.mxu0 0
  %240 = vmatpush1.bf16.msra.mxu0 0
  %241 = vmatprep.subr.bf16.mxu0 0
  %242 = vmatpush1.bf16.msra.mxu0 0
  %243 = vmatprep.subr.bf16.mxu0 0
  %244 = vmatpush1.bf16.msra.mxu0 0
  %245 = vmatprep.mubr.bf16.mxu0 %v190
  %246 = vmatmul.mubr.bf16.gmra.mrb[0].mxu0 %v110
  %v247 = vpop.f32.mrb[0].mxu0
  %v248 = vadd.f32 %v60, %v247
  %v249 = vpop.f32.mrb[0].mxu0
  %v250 = vpop.f32.mrb[0].mxu0
  %v251 = vadd.f32 %v60, %v250
  %v252 = vpop.f32.mrb[0].mxu0
  %253 = vmatprep.mubr.bf16.mxu0 %v193
  %254 = vmatmul.mubr.bf16.gmra.mrb[0].mxu0 %v112
  %v255 = vpop.f32.mrb[0].mxu0
  %v256 = vadd.f32 %v60, %v255
  %v257 = vpop.f32.mrb[0].mxu0
  %v258 = vpop.f32.mrb[0].mxu0
  %v259 = vadd.f32 %v60, %v258
  %v260 = vpop.f32.mrb[0].mxu0
  %261 = vmatprep.mubr.bf16.mxu0 %v196
  %262 = vmatmul.mubr.bf16.gmra.mrb[0].mxu0 %v114
  %v263 = vpop.f32.mrb[0].mxu0
  %v264 = vadd.f32 %v60, %v263
  %v265 = vpop.f32.mrb[0].mxu0
  %v266 = vpop.f32.mrb[0].mxu0
  %v267 = vadd.f32 %v60, %v266
  %v268 = vpop.f32.mrb[0].mxu0
  %269 = vmatprep.mubr.bf16.mxu0 %v199
  %270 = vmatmul.mubr.bf16.gmra.mrb[0].mxu0 %v116
  %v271 = vpop.f32.mrb[0].mxu0
  %v272 = vadd.f32 %v60, %v271
  %v273 = vpop.f32.mrb[0].mxu0
  %v274 = vpop.f32.mrb[0].mxu0
  %v275 = vadd.f32 %v60, %v274
  %v276 = vpop.f32.mrb[0].mxu0
  %277 = vmatprep.mubr.bf16.mxu0 %v202
  %278 = vmatmul.mubr.bf16.gmra.mrb[0].mxu0 %v118
  %v279 = vpop.f32.mrb[0].mxu0
  %v280 = vadd.f32 %v60, %v279
  %v281 = vpop.f32.mrb[0].mxu0
  %v282 = vpop.f32.mrb[0].mxu0
  %v283 = vadd.f32 %v60, %v282
  %v284 = vpop.f32.mrb[0].mxu0
  %285 = vmatprep.mubr.bf16.mxu0 %v205
  %286 = vmatmul.mubr.bf16.gmra.mrb[0].mxu0 %v120
  %v287 = vpop.f32.mrb[0].mxu0
  %v288 = vadd.f32 %v60, %v287
  %v289 = vpop.f32.mrb[0].mxu0
  %v290 = vpop.f32.mrb[0].mxu0
  %v291 = vadd.f32 %v60, %v290
  %v292 = vpop.f32.mrb[0].mxu0
  %293 = vmatprep.mubr.bf16.mxu0 %v208
  %294 = vmatmul.mubr.bf16.gmra.mrb[0].mxu0 %v122
  %v295 = vpop.f32.mrb[0].mxu0
  %v296 = vadd.f32 %v60, %v295
  %v297 = vpop.f32.mrb[0].mxu0
  %v298 = vpop.f32.mrb[0].mxu0
  %v299 = vadd.f32 %v60, %v298
  %v300 = vpop.f32.mrb[0].mxu0
  %301 = vmatprep.mubr.bf16.mxu0 %v211
  %302 = vmatmul.mubr.bf16.gmra.mrb[0].mxu0 %v124
  %v303 = vpop.f32.mrb[0].mxu0
  %v304 = vadd.f32 %v60, %v303
  %v305 = vpop.f32.mrb[0].mxu0
  %v306 = vpop.f32.mrb[0].mxu0
  %v307 = vadd.f32 %v60, %v306
  %v308 = vpop.f32.mrb[0].mxu0
  %309 = vdwg.mxu0
  %v310 = vmul.f32 %v248, 0.5
  %v311 = vmul.f32 %v251, 0.5
  %v312 = vmul.f32 %v256, 0.5
  %v313 = vmul.f32 %v259, 0.5
  %v314 = vmul.f32 %v264, 0.5
  %v315 = vmul.f32 %v267, 0.5
  %v316 = vmul.f32 %v272, 0.5
  %v317 = vmul.f32 %v275, 0.5
  %v318 = vmul.f32 %v280, 0.5
  %v319 = vmul.f32 %v283, 0.5
  %v320 = vmul.f32 %v288, 0.5
  %v321 = vmul.f32 %v291, 0.5
  %v322 = vmul.f32 %v296, 0.5
  %v323 = vmul.f32 %v299, 0.5
  %v324 = vmul.f32 %v304, 0.5
  %v325 = vmul.f32 %v307, 0.5
  %v326 = vmul.f32 %v248, 0.70710677
  %v327 = vmul.f32 %v251, 0.70710677
  %v328 = vmul.f32 %v256, 0.70710677
  %v329 = vmul.f32 %v259, 0.70710677
  %v330 = vmul.f32 %v264, 0.70710677
  %v331 = vmul.f32 %v267, 0.70710677
  %v332 = vmul.f32 %v272, 0.70710677
  %v333 = vmul.f32 %v275, 0.70710677
  %v334 = vmul.f32 %v280, 0.70710677
  %v335 = vmul.f32 %v283, 0.70710677
  %v336 = vmul.f32 %v288, 0.70710677
  %v337 = vmul.f32 %v291, 0.70710677
  %v338 = vmul.f32 %v296, 0.70710677
  %v339 = vmul.f32 %v299, 0.70710677
  %v340 = vmul.f32 %v304, 0.70710677
  %v341 = vmul.f32 %v307, 0.70710677
  %v342 = verf.f32.pop %v326
  %v343 = verf.f32.pop %v327
  %v344 = verf.f32.pop %v328
  %v345 = verf.f32.pop %v329
  %v346 = verf.f32.pop %v330
  %v347 = verf.f32.pop %v331
  %v348 = verf.f32.pop %v332
  %v349 = verf.f32.pop %v333
  %v350 = verf.f32.pop %v334
  %v351 = verf.f32.pop %v335
  %v352 = verf.f32.pop %v336
  %v353 = verf.f32.pop %v337
  %v354 = verf.f32.pop %v338
  %v355 = verf.f32.pop %v339
  %v356 = verf.f32.pop %v340
  %v357 = verf.f32.pop %v341
  %v358 = vadd.f32 %v342, 1.0
  %v359 = vadd.f32 %v343, 1.0
  %v360 = vadd.f32 %v344, 1.0
  %v361 = vadd.f32 %v345, 1.0
  %v362 = vadd.f32 %v346, 1.0
  %v363 = vadd.f32 %v347, 1.0
  %v364 = vadd.f32 %v348, 1.0
  %v365 = vadd.f32 %v349, 1.0
  %v366 = vadd.f32 %v350, 1.0
  %v367 = vadd.f32 %v351, 1.0
  %v368 = vadd.f32 %v352, 1.0
  %v369 = vadd.f32 %v353, 1.0
  %v370 = vadd.f32 %v354, 1.0
  %v371 = vadd.f32 %v355, 1.0
  %v372 = vadd.f32 %v356, 1.0
  %v373 = vadd.f32 %v357, 1.0
  %v374 = vmul.f32 %v310, %v358
  %v375 = vmul.f32 %v311, %v359
  %v376 = vmul.f32 %v312, %v360
  %v377 = vmul.f32 %v313, %v361
  %v378 = vmul.f32 %v314, %v362
  %v379 = vmul.f32 %v315, %v363
  %v380 = vmul.f32 %v316, %v364
  %v381 = vmul.f32 %v317, %v365
  %v382 = vmul.f32 %v318, %v366
  %v383 = vmul.f32 %v319, %v367
  %v384 = vmul.f32 %v320, %v368
  %v385 = vmul.f32 %v321, %v369
  %v386 = vmul.f32 %v322, %v370
  %v387 = vmul.f32 %v323, %v371
  %v388 = vmul.f32 %v324, %v372
  %v389 = vmul.f32 %v325, %v373
  %v390 = vld [vmem:[%s3] sm:$0x1]
  %v392 = vlaneseq
  %v393 = vshrl.u32 %v392, 7
  %v394 = vsub.s32 0, %v393
  %v395 = vrot.slane %v390, %v394
  %v397 = vmul.f32 %v374, %v395
  %v398 = vmul.f32 %v375, %v395
  %v399 = vmul.f32 %v376, %v395
  %v400 = vmul.f32 %v377, %v395
  %v401 = vmul.f32 %v378, %v395
  %v402 = vmul.f32 %v379, %v395
  %v403 = vmul.f32 %v380, %v395
  %v404 = vmul.f32 %v381, %v395
  %v405 = vmul.f32 %v382, %v395
  %v406 = vmul.f32 %v383, %v395
  %v407 = vmul.f32 %v384, %v395
  %v408 = vmul.f32 %v385, %v395
  %v409 = vmul.f32 %v386, %v395
  %v410 = vmul.f32 %v387, %v395
  %v411 = vmul.f32 %v388, %v395
  %v412 = vmul.f32 %v389, %v395
  %v413 = vld [vmem:[%s4] sm:$0x1]
  %v415 = vlaneseq
  %v416 = vshrl.u32 %v415, 7
  %v417 = vsub.s32 0, %v416
  %v418 = vrot.slane %v413, %v417
  %v420 = vadd.f32 %v397, %v418
  %v421 = vadd.f32 %v398, %v418
  %v422 = vadd.f32 %v399, %v418
  %v423 = vadd.f32 %v400, %v418
  %v424 = vadd.f32 %v401, %v418
  %v425 = vadd.f32 %v402, %v418
  %v426 = vadd.f32 %v403, %v418
  %v427 = vadd.f32 %v404, %v418
  %v428 = vadd.f32 %v405, %v418
  %v429 = vadd.f32 %v406, %v418
  %v430 = vadd.f32 %v407, %v418
  %v431 = vadd.f32 %v408, %v418
  %v432 = vadd.f32 %v409, %v418
  %v433 = vadd.f32 %v410, %v418
  %v434 = vadd.f32 %v411, %v418
  %v435 = vadd.f32 %v412, %v418
  %v436 = vpack.c.bf16 %v421, %v420
  %v437 = vpack.c.bf16 %v423, %v422
  %v438 = vpack.c.bf16 %v425, %v424
  %v439 = vpack.c.bf16 %v427, %v426
  %v440 = vpack.c.bf16 %v429, %v428
  %v441 = vpack.c.bf16 %v431, %v430
  %v442 = vpack.c.bf16 %v433, %v432
  %v443 = vpack.c.bf16 %v435, %v434
  %v452 = vunpack.c.l.b16 %v436
  %v453 = vunpack.c.h.b16 %v436
  %v454 = vunpack.c.l.b16 %v437
  %v455 = vunpack.c.h.b16 %v437
  %v456 = vunpack.c.l.b16 %v438
  %v457 = vunpack.c.h.b16 %v438
  %v458 = vunpack.c.l.b16 %v439
  %v459 = vunpack.c.h.b16 %v439
  %v460 = vunpack.c.l.b16 %v440
  %v461 = vunpack.c.h.b16 %v440
  %v462 = vunpack.c.l.b16 %v441
  %v463 = vunpack.c.h.b16 %v441
  %v464 = vunpack.c.l.b16 %v442
  %v465 = vunpack.c.h.b16 %v442
  %v466 = vunpack.c.l.b16 %v443
  %v467 = vunpack.c.h.b16 %v443
  %v468 = vpack.c.b16 %v452, %v452
  %v469 = vpack.c.b16 %v453, %v453
  %v470 = vpack.c.b16 %v454, %v454
  %v471 = vpack.c.b16 %v455, %v455
  %v472 = vpack.c.b16 %v456, %v456
  %v473 = vpack.c.b16 %v457, %v457
  %v474 = vpack.c.b16 %v458, %v458
  %v475 = vpack.c.b16 %v459, %v459
  %v476 = vpack.c.b16 %v460, %v460
  %v477 = vpack.c.b16 %v461, %v461
  %v478 = vpack.c.b16 %v462, %v462
  %v479 = vpack.c.b16 %v463, %v463
  %v480 = vpack.c.b16 %v464, %v464
  %v481 = vpack.c.b16 %v465, %v465
  %v482 = vpack.c.b16 %v466, %v466
  %v483 = vpack.c.b16 %v467, %v467
  %500 = vst [vmem:[%s5] sm:$0xf] %v468
  %501 = vst [vmem:[%s5 + $0x4] sm:$0xf] %v469
  %502 = vst [vmem:[%s5 + $0x8] sm:$0xf] %v470
  %503 = vst [vmem:[%s5 + $0xc] sm:$0xf] %v471
  %504 = vst [vmem:[%s5 + $0x10] sm:$0xf] %v472
  %505 = vst [vmem:[%s5 + $0x14] sm:$0xf] %v473
  %506 = vst [vmem:[%s5 + $0x18] sm:$0xf] %v474
  %507 = vst [vmem:[%s5 + $0x1c] sm:$0xf] %v475
  %508 = vst [vmem:[%s5 + $0x20] sm:$0xf] %v476
  %509 = vst [vmem:[%s5 + $0x24] sm:$0xf] %v477
  %510 = vst [vmem:[%s5 + $0x28] sm:$0xf] %v478
  %511 = vst [vmem:[%s5 + $0x2c] sm:$0xf] %v479
  %512 = vst [vmem:[%s5 + $0x30] sm:$0xf] %v480
  %513 = vst [vmem:[%s5 + $0x34] sm:$0xf] %v481
  %514 = vst [vmem:[%s5 + $0x38] sm:$0xf] %v482
  %515 = vst [vmem:[%s5 + $0x3c] sm:$0xf] %v483
  // Predicated region
  $region22: #{patch_embed.5} parent=0 // pred_check
    _
  $region23: #{patch_embed.5} parent=0 // pred_check_branch
    %517 = sbr.rel (0) target = $region25
  $region24: #{patch_embed.5} parent=0 // pred_region
    _
  $region25: #{patch_embed.5} parent=0 // pred_fallthru
    _
  // Predicated region
  $region26: #{patch_embed.5} parent=0 // pred_check
    _
  $region27: #{patch_embed.5} parent=0 // pred_check_branch
    %519 = sbr.rel (0) target = $region29
  $region28: #{patch_embed.5} parent=0 // pred_region
    _
  $region29: #{patch_embed.5} parent=0 // pred_fallthru
    _

// kernel: patch_embed.6
$region0: #{patch_embed.6}
  #allocation0 [shape = 'u32[]', space=smem, size = 0x4, offset = 0x4, fixed_abs, tag = 'smem constant byte address 0x4 - core index']
  #allocation1 [shape = 'u32[144,128]{1,0:T(1,128)}', space=vmem, size = 0x12000, scoped, tag = 'internal scratch']
  %s0 = inlined_call_operand.vmem [shape: bf16[32,144], index: 0, kind: input, shape index: {}]
  %s1 = inlined_call_operand.vmem [shape: bf16[144,128], index: 1, kind: input, shape index: {}]
  %s2 = inlined_call_operand.vmem [shape: f32[1,128], index: 2, kind: input, shape index: {}]
  %s3 = inlined_call_operand.vmem [shape: f32[1,128], index: 3, kind: input, shape index: {}]
  %s4 = inlined_call_operand.vmem [shape: f32[1,128], index: 4, kind: input, shape index: {}]
  %s5 = inlined_call_operand.vmem [shape: bf16[32,128], index: 5, kind: output, shape index: {}]
  %s6 = sld [smem:[#allocation0]]
  $region30: #{patch_embed.6} parent=0
    _
  %s8 = ssub.s32 1, %s6
  %s9 = scalar_select 0, %s8, %s6
  // Predicated region
  $region2: #{patch_embed.6} parent=0 // pred_check
    _
  $region3: #{patch_embed.6} parent=0 // pred_check_branch
    %11 = sbr.rel (0) target = $region5
  $region4: #{patch_embed.6} parent=0 // pred_region
    _
  $region5: #{patch_embed.6} parent=0 // pred_fallthru
    _
  // Predicated region
  $region6: #{patch_embed.6} parent=0 // pred_check
    _
  $region7: #{patch_embed.6} parent=0 // pred_check_branch
    %13 = sbr.rel (0) target = $region9
  $region8: #{patch_embed.6} parent=0 // pred_region
    _
  $region9: #{patch_embed.6} parent=0 // pred_fallthru
    _
  // Predicated region
  $region10: #{patch_embed.6} parent=0 // pred_check
    _
  $region11: #{patch_embed.6} parent=0 // pred_check_branch
    %15 = sbr.rel (0) target = $region13
  $region12: #{patch_embed.6} parent=0 // pred_region
    _
  $region13: #{patch_embed.6} parent=0 // pred_fallthru
    _
  // Predicated region
  $region14: #{patch_embed.6} parent=0 // pred_check
    _
  $region15: #{patch_embed.6} parent=0 // pred_check_branch
    %17 = sbr.rel (0) target = $region17
  $region16: #{patch_embed.6} parent=0 // pred_region
    _
  $region17: #{patch_embed.6} parent=0 // pred_fallthru
    _
  // Predicated region
  $region18: #{patch_embed.6} parent=0 // pred_check
    _
  $region19: #{patch_embed.6} parent=0 // pred_check_branch
    %19 = sbr.rel (0) target = $region21
  $region20: #{patch_embed.6} parent=0 // pred_region
    _
  $region21: #{patch_embed.6} parent=0 // pred_fallthru
    _
  %v21 = vld [vmem:[%s0] sm:$0xff]
  %v22 = vld [vmem:[%s0 + $0x8] sm:$0xff]
  %v23 = vld [vmem:[%s0 + $0x10] sm:$0xff]
  %v24 = vld [vmem:[%s0 + $0x18] sm:$0xff]
  %v25 = vld [vmem:[%s1] sm:$0xf]
  %v26 = vld [vmem:[%s1 + $0x4] sm:$0xf]
  %v27 = vld [vmem:[%s1 + $0x8] sm:$0xf]
  %v28 = vld [vmem:[%s1 + $0xc] sm:$0xf]
  %v29 = vld [vmem:[%s1 + $0x10] sm:$0xf]
  %v30 = vld [vmem:[%s1 + $0x14] sm:$0xf]
  %v31 = vld [vmem:[%s1 + $0x18] sm:$0xf]
  %v32 = vld [vmem:[%s1 + $0x1c] sm:$0xf]
  %v33 = vld [vmem:[%s1 + $0x20] sm:$0xf]
  %v34 = vld [vmem:[%s1 + $0x24] sm:$0xf]
  %v35 = vld [vmem:[%s1 + $0x28] sm:$0xf]
  %v36 = vld [vmem:[%s1 + $0x2c] sm:$0xf]
  %v37 = vld [vmem:[%s1 + $0x30] sm:$0xf]
  %v38 = vld [vmem:[%s1 + $0x34] sm:$0xf]
  %v39 = vld [vmem:[%s1 + $0x38] sm:$0xf]
  %v40 = vld [vmem:[%s1 + $0x3c] sm:$0xf]
  %v41 = vld [vmem:[%s1 + $0x40] sm:$0xf]
  %v42 = vld [vmem:[%s1 + $0x44] sm:$0xf]
  %v43 = vld [vmem:[%s2] sm:$0x1]
  %v45 = vlaneseq
  %v46 = vshrl.u32 %v45, 7
  %v47 = vsub.s32 0, %v46
  %v48 = vrot.slane %v43, %v47
  %v54 = vunpack.c.l.b16 %v21
  %v55 = vunpack.c.h.b16 %v21
  %v56 = vunpack.c.l.b16 %v22
  %v57 = vunpack.c.h.b16 %v22
  %v58 = vunpack.c.l.b16 %v23
  %v59 = vunpack.c.h.b16 %v23
  %v60 = vunpack.c.l.b16 %v24
  %v61 = vunpack.c.h.b16 %v24
  %v62 = vpack.c.b16 %v56, %v54
  %v63 = vpack.c.b16 %v57, %v55
  %v64 = vpack.c.b16 %v60, %v58
  %v65 = vpack.c.b16 %v61, %v59
  %v86 = vunpack.c.l.b16 %v25
  %v87 = vunpack.c.l.b16 %v26
  %v88 = vunpack.c.l.b16 %v27
  %v89 = vunpack.c.l.b16 %v28
  %v90 = vunpack.c.l.b16 %v29
  %v91 = vunpack.c.l.b16 %v30
  %v92 = vunpack.c.l.b16 %v31
  %v93 = vunpack.c.l.b16 %v32
  %v94 = vunpack.c.l.b16 %v33
  %v95 = vunpack.c.l.b16 %v34
  %v96 = vunpack.c.l.b16 %v35
  %v97 = vunpack.c.l.b16 %v36
  %v98 = vunpack.c.l.b16 %v37
  %v99 = vunpack.c.l.b16 %v38
  %v100 = vunpack.c.l.b16 %v39
  %v101 = vunpack.c.l.b16 %v40
  %v102 = vunpack.c.l.b16 %v41
  %v103 = vunpack.c.l.b16 %v42
  %v104 = vpack.c.b16 %v87, %v86
  %v105 = vpack.c.b16 %v89, %v88
  %v106 = vpack.c.b16 %v91, %v90
  %v107 = vpack.c.b16 %v93, %v92
  %v108 = vpack.c.b16 %v95, %v94
  %v109 = vpack.c.b16 %v97, %v96
  %v110 = vpack.c.b16 %v99, %v98
  %v111 = vpack.c.b16 %v101, %v100
  %v112 = vpack.c.b16 %v103, %v102
  %vm122 = vcmask 130048
  %v124 = vsel %vm122, %v63, 0
  %v127 = vsel %vm122, %v65, 0
  %129 = vmatprep.subr.bf16.mxu0 0
  %130 = vmatpush1.bf16.msra.mxu0 %v104
  %131 = vmatprep.subr.bf16.mxu0 0
  %132 = vmatpush1.bf16.msra.mxu0 %v105
  %133 = vmatprep.subr.bf16.mxu0 0
  %134 = vmatpush1.bf16.msra.mxu0 %v106
  %135 = vmatprep.subr.bf16.mxu0 0
  %136 = vmatpush1.bf16.msra.mxu0 %v107
  %137 = vmatprep.subr.bf16.mxu0 0
  %138 = vmatpush1.bf16.msra.mxu0 %v108
  %139 = vmatprep.subr.bf16.mxu0 0
  %140 = vmatpush1.bf16.msra.mxu0 %v109
  %141 = vmatprep.subr.bf16.mxu0 0
  %142 = vmatpush1.bf16.msra.mxu0 %v110
  %143 = vmatprep.subr.bf16.mxu0 0
  %144 = vmatpush1.bf16.msra.mxu0 %v111
  %145 = vmatprep.subr.bf16.mxu0 0
  %146 = vmatpush1.bf16.msra.mxu0 %v112
  %147 = vmatprep.subr.bf16.mxu0 0
  %148 = vmatpush1.bf16.msra.mxu0 0
  %149 = vmatprep.subr.bf16.mxu0 0
  %150 = vmatpush1.bf16.msra.mxu0 0
  %151 = vmatprep.subr.bf16.mxu0 0
  %152 = vmatpush1.bf16.msra.mxu0 0
  %153 = vmatprep.subr.bf16.mxu0 0
  %154 = vmatpush1.bf16.msra.mxu0 0
  %155 = vmatprep.subr.bf16.mxu0 0
  %156 = vmatpush1.bf16.msra.mxu0 0
  %157 = vmatprep.subr.bf16.mxu0 0
  %158 = vmatpush1.bf16.msra.mxu0 0
  %159 = vmatprep.subr.bf16.mxu0 0
  %160 = vmatpush1.bf16.msra.mxu0 0
  %161 = vmatprep.mubr.bf16.mxu0 %v124
  %162 = vmatmul.mubr.bf16.gmra.mrb[0].mxu0 %v62
  %v163 = vpop.f32.mrb[0].mxu0
  %v164 = vadd.f32 %v48, %v163
  %v165 = vpop.f32.mrb[0].mxu0
  %v166 = vpop.f32.mrb[0].mxu0
  %v167 = vadd.f32 %v48, %v166
  %v168 = vpop.f32.mrb[0].mxu0
  %169 = vmatprep.mubr.bf16.mxu0 %v127
  %170 = vmatmul.mubr.bf16.gmra.mrb[0].mxu0 %v64
  %v171 = vpop.f32.mrb[0].mxu0
  %v172 = vadd.f32 %v48, %v171
  %v173 = vpop.f32.mrb[0].mxu0
  %v174 = vpop.f32.mrb[0].mxu0
  %v175 = vadd.f32 %v48, %v174
  %v176 = vpop.f32.mrb[0].mxu0
  %177 = vdwg.mxu0
  %v178 = vmul.f32 %v164, 0.5
  %v179 = vmul.f32 %v167, 0.5
  %v180 = vmul.f32 %v172, 0.5
  %v181 = vmul.f32 %v175, 0.5
  %v182 = vmul.f32 %v164, 0.70710677
  %v183 = vmul.f32 %v167, 0.70710677
  %v184 = vmul.f32 %v172, 0.70710677
  %v185 = vmul.f32 %v175, 0.70710677
  %v186 = verf.f32.pop %v182
  %v187 = verf.f32.pop %v183
  %v188 = verf.f32.pop %v184
  %v189 = verf.f32.pop %v185
  %v190 = vadd.f32 %v186, 1.0
  %v191 = vadd.f32 %v187, 1.0
  %v192 = vadd.f32 %v188, 1.0
  %v193 = vadd.f32 %v189, 1.0
  %v194 = vmul.f32 %v178, %v190
  %v195 = vmul.f32 %v179, %v191
  %v196 = vmul.f32 %v180, %v192
  %v197 = vmul.f32 %v181, %v193
  %v198 = vld [vmem:[%s3] sm:$0x1]
  %v200 = vlaneseq
  %v201 = vshrl.u32 %v200, 7
  %v202 = vsub.s32 0, %v201
  %v203 = vrot.slane %v198, %v202
  %v205 = vmul.f32 %v194, %v203
  %v206 = vmul.f32 %v195, %v203
  %v207 = vmul.f32 %v196, %v203
  %v208 = vmul.f32 %v197, %v203
  %v209 = vld [vmem:[%s4] sm:$0x1]
  %v211 = vlaneseq
  %v212 = vshrl.u32 %v211, 7
  %v213 = vsub.s32 0, %v212
  %v214 = vrot.slane %v209, %v213
  %v216 = vadd.f32 %v205, %v214
  %v217 = vadd.f32 %v206, %v214
  %v218 = vadd.f32 %v207, %v214
  %v219 = vadd.f32 %v208, %v214
  %v220 = vpack.c.bf16 %v217, %v216
  %v221 = vpack.c.bf16 %v219, %v218
  %v224 = vunpack.c.l.b16 %v220
  %v225 = vunpack.c.h.b16 %v220
  %v226 = vunpack.c.l.b16 %v221
  %v227 = vunpack.c.h.b16 %v221
  %v228 = vpack.c.b16 %v224, %v224
  %v229 = vpack.c.b16 %v225, %v225
  %v230 = vpack.c.b16 %v226, %v226
  %v231 = vpack.c.b16 %v227, %v227
  %236 = vst [vmem:[%s5] sm:$0xf] %v228
  %237 = vst [vmem:[%s5 + $0x4] sm:$0xf] %v229
  %238 = vst [vmem:[%s5 + $0x8] sm:$0xf] %v230
  %239 = vst [vmem:[%s5 + $0xc] sm:$0xf] %v231
  // Predicated region
  $region22: #{patch_embed.6} parent=0 // pred_check
    _
  $region23: #{patch_embed.6} parent=0 // pred_check_branch
    %241 = sbr.rel (0) target = $region25
  $region24: #{patch_embed.6} parent=0 // pred_region
    _
  $region25: #{patch_embed.6} parent=0 // pred_fallthru
    _
  // Predicated region
  $region26: #{patch_embed.6} parent=0 // pred_check
    _
  $region27: #{patch_embed.6} parent=0 // pred_check_branch
    %243 = sbr.rel (0) target = $region29
  $region28: #{patch_embed.6} parent=0 // pred_region
    _
  $region29: #{patch_embed.6} parent=0 // pred_fallthru
    _

// kernel: patch_embed.7
$region0: #{patch_embed.7}
  #allocation0 [shape = 'u32[]', space=smem, size = 0x4, offset = 0x4, fixed_abs, tag = 'smem constant byte address 0x4 - core index']
  #allocation1 [shape = 'u32[144,128]{1,0:T(1,128)}', space=vmem, size = 0x12000, scoped, tag = 'internal scratch']
  %s0 = inlined_call_operand.vmem [shape: bf16[32,288], index: 0, kind: input, shape index: {}]
  %s1 = inlined_call_operand.vmem [shape: bf16[288,128], index: 1, kind: input, shape index: {}]
  %s2 = inlined_call_operand.vmem [shape: f32[1,128], index: 2, kind: input, shape index: {}]
  %s3 = inlined_call_operand.vmem [shape: f32[1,128], index: 3, kind: input, shape index: {}]
  %s4 = inlined_call_operand.vmem [shape: f32[1,128], index: 4, kind: input, shape index: {}]
  %s5 = inlined_call_operand.hbm [shape: f32[32,128], index: 5, kind: output, shape index: {}]
  %s6 = sld [smem:[#allocation0]]
  $region30: #{patch_embed.7} parent=0
    _
  %s8 = ssub.s32 1, %s6
  %s9 = scalar_select 0, %s8, %s6
  $region1: #{patch_embed.7} parent=0
    #allocation2 [shape = 'u8[16384]{0}', space=vmem, size = 0x4000, scoped, tag = 'output window, operand 0, single buffered']
    #allocation3 [shape = 's32[1]{0}', space=sflag, size = 0x4, scoped, tag = 'scoped memory for patch_embed.7']
    %10 = vsyncpa [#allocation3], 0
    // Predicated region
    $region2: #{patch_embed.7} parent=1 // pred_check
      _
    $region3: #{patch_embed.7} parent=1 // pred_check_branch
      %12 = sbr.rel (0) target = $region5
    $region4: #{patch_embed.7} parent=1 // pred_region
      _
    $region5: #{patch_embed.7} parent=1 // pred_fallthru
      _
    // Predicated region
    $region6: #{patch_embed.7} parent=1 // pred_check
      _
    $region7: #{patch_embed.7} parent=1 // pred_check_branch
      %14 = sbr.rel (0) target = $region9
    $region8: #{patch_embed.7} parent=1 // pred_region
      _
    $region9: #{patch_embed.7} parent=1 // pred_fallthru
      _
    // Predicated region
    $region10: #{patch_embed.7} parent=1 // pred_check
      _
    $region11: #{patch_embed.7} parent=1 // pred_check_branch
      %16 = sbr.rel (0) target = $region13
    $region12: #{patch_embed.7} parent=1 // pred_region
      _
    $region13: #{patch_embed.7} parent=1 // pred_fallthru
      _
    // Predicated region
    $region14: #{patch_embed.7} parent=1 // pred_check
      _
    $region15: #{patch_embed.7} parent=1 // pred_check_branch
      %18 = sbr.rel (0) target = $region17
    $region16: #{patch_embed.7} parent=1 // pred_region
      _
    $region17: #{patch_embed.7} parent=1 // pred_fallthru
      _
    // Predicated region
    $region18: #{patch_embed.7} parent=1 // pred_check
      _
    $region19: #{patch_embed.7} parent=1 // pred_check_branch
      %20 = sbr.rel (0) target = $region21
    $region20: #{patch_embed.7} parent=1 // pred_region
      _
    $region21: #{patch_embed.7} parent=1 // pred_fallthru
      _
    %v22 = vld [vmem:[%s0] sm:$0xff]
    %v23 = vld [vmem:[%s0 + $0x8] sm:$0xf]
    %v24 = vld [vmem:[%s0 + $0xc] sm:$0xff]
    %v25 = vld [vmem:[%s0 + $0x14] sm:$0xf]
    %v26 = vld [vmem:[%s0 + $0x18] sm:$0xff]
    %v27 = vld [vmem:[%s0 + $0x20] sm:$0xf]
    %v28 = vld [vmem:[%s0 + $0x24] sm:$0xff]
    %v29 = vld [vmem:[%s0 + $0x2c] sm:$0xf]
    %v30 = vld [vmem:[%s1] sm:$0xf]
    %v31 = vld [vmem:[%s1 + $0x4] sm:$0xf]
    %v32 = vld [vmem:[%s1 + $0x8] sm:$0xf]
    %v33 = vld [vmem:[%s1 + $0xc] sm:$0xf]
    %v34 = vld [vmem:[%s1 + $0x10] sm:$0xf]
    %v35 = vld [vmem:[%s1 + $0x14] sm:$0xf]
    %v36 = vld [vmem:[%s1 + $0x18] sm:$0xf]
    %v37 = vld [vmem:[%s1 + $0x1c] sm:$0xf]
    %v38 = vld [vmem:[%s1 + $0x20] sm:$0xf]
    %v39 = vld [vmem:[%s1 + $0x24] sm:$0xf]
    %v40 = vld [vmem:[%s1 + $0x28] sm:$0xf]
    %v41 = vld [vmem:[%s1 + $0x2c] sm:$0xf]
    %v42 = vld [vmem:[%s1 + $0x30] sm:$0xf]
    %v43 = vld [vmem:[%s1 + $0x34] sm:$0xf]
    %v44 = vld [vmem:[%s1 + $0x38] sm:$0xf]
    %v45 = vld [vmem:[%s1 + $0x3c] sm:$0xf]
    %v46 = vld [vmem:[%s1 + $0x40] sm:$0xf]
    %v47 = vld [vmem:[%s1 + $0x44] sm:$0xf]
    %v48 = vld [vmem:[%s1 + $0x48] sm:$0xf]
    %v49 = vld [vmem:[%s1 + $0x4c] sm:$0xf]
    %v50 = vld [vmem:[%s1 + $0x50] sm:$0xf]
    %v51 = vld [vmem:[%s1 + $0x54] sm:$0xf]
    %v52 = vld [vmem:[%s1 + $0x58] sm:$0xf]
    %v53 = vld [vmem:[%s1 + $0x5c] sm:$0xf]
    %v54 = vld [vmem:[%s1 + $0x60] sm:$0xf]
    %v55 = vld [vmem:[%s1 + $0x64] sm:$0xf]
    %v56 = vld [vmem:[%s1 + $0x68] sm:$0xf]
    %v57 = vld [vmem:[%s1 + $0x6c] sm:$0xf]
    %v58 = vld [vmem:[%s1 + $0x70] sm:$0xf]
    %v59 = vld [vmem:[%s1 + $0x74] sm:$0xf]
    %v60 = vld [vmem:[%s1 + $0x78] sm:$0xf]
    %v61 = vld [vmem:[%s1 + $0x7c] sm:$0xf]
    %v62 = vld [vmem:[%s1 + $0x80] sm:$0xf]
    %v63 = vld [vmem:[%s1 + $0x84] sm:$0xf]
    %v64 = vld [vmem:[%s1 + $0x88] sm:$0xf]
    %v65 = vld [vmem:[%s1 + $0x8c] sm:$0xf]
    %v66 = vld [vmem:[%s2] sm:$0x1]
    %v68 = vlaneseq
    %v69 = vshrl.u32 %v68, 7
    %v70 = vsub.s32 0, %v69
    %v71 = vrot.slane %v66, %v70
    %v81 = vunpack.c.l.b16 %v22
    %v82 = vunpack.c.h.b16 %v22
    %v83 = vunpack.c.l.b16 %v23
    %v84 = vunpack.c.l.b16 %v24
    %v85 = vunpack.c.h.b16 %v24
    %v86 = vunpack.c.l.b16 %v25
    %v87 = vunpack.c.l.b16 %v26
    %v88 = vunpack.c.h.b16 %v26
    %v89 = vunpack.c.l.b16 %v27
    %v90 = vunpack.c.l.b16 %v28
    %v91 = vunpack.c.h.b16 %v28
    %v92 = vunpack.c.l.b16 %v29
    %v93 = vpack.c.b16 %v84, %v81
    %v94 = vpack.c.b16 %v85, %v82
    %v95 = vpack.c.b16 %v86, %v83
    %v96 = vpack.c.b16 %v90, %v87
    %v97 = vpack.c.b16 %v91, %v88
    %v98 = vpack.c.b16 %v92, %v89
    %v139 = vunpack.c.l.b16 %v30
    %v140 = vunpack.c.l.b16 %v31
    %v141 = vunpack.c.l.b16 %v32
    %v142 = vunpack.c.l.b16 %v33
    %v143 = vunpack.c.l.b16 %v34
    %v144 = vunpack.c.l.b16 %v35
    %v145 = vunpack.c.l.b16 %v36
    %v146 = vunpack.c.l.b16 %v37
    %v147 = vunpack.c.l.b16 %v38
    %v148 = vunpack.c.l.b16 %v39
    %v149 = vunpack.c.l.b16 %v40
    %v150 = vunpack.c.l.b16 %v41
    %v151 = vunpack.c.l.b16 %v42
    %v152 = vunpack.c.l.b16 %v43
    %v153 = vunpack.c.l.b16 %v44
    %v154 = vunpack.c.l.b16 %v45
    %v155 = vunpack.c.l.b16 %v46
    %v156 = vunpack.c.l.b16 %v47
    %v157 = vunpack.c.l.b16 %v48
    %v158 = vunpack.c.l.b16 %v49
    %v159 = vunpack.c.l.b16 %v50
    %v160 = vunpack.c.l.b16 %v51
    %v161 = vunpack.c.l.b16 %v52
    %v162 = vunpack.c.l.b16 %v53
    %v163 = vunpack.c.l.b16 %v54
    %v164 = vunpack.c.l.b16 %v55
    %v165 = vunpack.c.l.b16 %v56
    %v166 = vunpack.c.l.b16 %v57
    %v167 = vunpack.c.l.b16 %v58
    %v168 = vunpack.c.l.b16 %v59
    %v169 = vunpack.c.l.b16 %v60
    %v170 = vunpack.c.l.b16 %v61
    %v171 = vunpack.c.l.b16 %v62
    %v172 = vunpack.c.l.b16 %v63
    %v173 = vunpack.c.l.b16 %v64
    %v174 = vunpack.c.l.b16 %v65
    %v175 = vpack.c.b16 %v140, %v139
    %v176 = vpack.c.b16 %v142, %v141
    %v177 = vpack.c.b16 %v144, %v143
    %v178 = vpack.c.b16 %v146, %v145
    %v179 = vpack.c.b16 %v148, %v147
    %v180 = vpack.c.b16 %v150, %v149
    %v181 = vpack.c.b16 %v152, %v151
    %v182 = vpack.c.b16 %v154, %v153
    %v183 = vpack.c.b16 %v156, %v155
    %v184 = vpack.c.b16 %v158, %v157
    %v185 = vpack.c.b16 %v160, %v159
    %v186 = vpack.c.b16 %v162, %v161
    %v187 = vpack.c.b16 %v164, %v163
    %v188 = vpack.c.b16 %v166, %v165
    %v189 = vpack.c.b16 %v168, %v167
    %v190 = vpack.c.b16 %v170, %v169
    %v191 = vpack.c.b16 %v172, %v171
    %v192 = vpack.c.b16 %v174, %v173
    %vm211 = vcmask 261120
    %v213 = vsel %vm211, %v95, 0
    %v216 = vsel %vm211, %v98, 0
    %218 = vmatprep.subr.bf16.mxu0 0
    %219 = vmatpush1.bf16.msra.mxu0 %v175
    %220 = vmatprep.subr.bf16.mxu0 0
    %221 = vmatpush1.bf16.msra.mxu0 %v176
    %222 = vmatprep.subr.bf16.mxu0 0
    %223 = vmatpush1.bf16.msra.mxu0 %v177
    %224 = vmatprep.subr.bf16.mxu0 0
    %225 = vmatpush1.bf16.msra.mxu0 %v178
    %226 = vmatprep.subr.bf16.mxu0 0
    %227 = vmatpush1.bf16.msra.mxu0 %v179
    %228 = vmatprep.subr.bf16.mxu0 0
    %229 = vmatpush1.bf16.msra.mxu0 %v180
    %230 = vmatprep.subr.bf16.mxu0 0
    %231 = vmatpush1.bf16.msra.mxu0 %v181
    %232 = vmatprep.subr.bf16.mxu0 0
    %233 = vmatpush1.bf16.msra.mxu0 %v182
    %234 = vmatprep.subr.bf16.mxu0 0
    %235 = vmatpush1.bf16.msra.mxu0 %v183
    %236 = vmatprep.subr.bf16.mxu0 0
    %237 = vmatpush1.bf16.msra.mxu0 %v184
    %238 = vmatprep.subr.bf16.mxu0 0
    %239 = vmatpush1.bf16.msra.mxu0 %v185
    %240 = vmatprep.subr.bf16.mxu0 0
    %241 = vmatpush1.bf16.msra.mxu0 %v186
    %242 = vmatprep.subr.bf16.mxu0 0
    %243 = vmatpush1.bf16.msra.mxu0 %v187
    %244 = vmatprep.subr.bf16.mxu0 0
    %245 = vmatpush1.bf16.msra.mxu0 %v188
    %246 = vmatprep.subr.bf16.mxu0 0
    %247 = vmatpush1.bf16.msra.mxu0 %v189
    %248 = vmatprep.subr.bf16.mxu0 0
    %249 = vmatpush1.bf16.msra.mxu0 %v190
    %250 = vmatprep.mubr.bf16.mxu0 %v94
    %251 = vmatmul.mubr.bf16.gmra.mrb[0].mxu0 %v93
    %v252 = vpop.f32.mrb[0].mxu0
    %v253 = vadd.f32 %v71, %v252
    %v254 = vpop.f32.mrb[0].mxu0
    %v255 = vpop.f32.mrb[0].mxu0
    %v256 = vadd.f32 %v71, %v255
    %v257 = vpop.f32.mrb[0].mxu0
    %258 = vmatprep.mubr.bf16.mxu0 %v97
    %259 = vmatmul.mubr.bf16.gmra.mrb[0].mxu0 %v96
    %v260 = vpop.f32.mrb[0].mxu0
    %v261 = vadd.f32 %v71, %v260
    %v262 = vpop.f32.mrb[0].mxu0
    %v263 = vpop.f32.mrb[0].mxu0
    %v264 = vadd.f32 %v71, %v263
    %v265 = vpop.f32.mrb[0].mxu0
    %266 = vdwg.mxu0
    %267 = vmatprep.subr.bf16.mxu0 0
    %268 = vmatpush1.bf16.msra.mxu0 %v191
    %269 = vmatprep.subr.bf16.mxu0 0
    %270 = vmatpush1.bf16.msra.mxu0 %v192
    %271 = vmatprep.subr.bf16.mxu0 0
    %272 = vmatpush1.bf16.msra.mxu0 0
    %273 = vmatprep.subr.bf16.mxu0 0
    %274 = vmatpush1.bf16.msra.mxu0 0
    %275 = vmatprep.subr.bf16.mxu0 0
    %276 = vmatpush1.bf16.msra.mxu0 0
    %277 = vmatprep.subr.bf16.mxu0 0
    %278 = vmatpush1.bf16.msra.mxu0 0
    %279 = vmatprep.subr.bf16.mxu0 0
    %280 = vmatpush1.bf16.msra.mxu0 0
    %281 = vmatprep.subr.bf16.mxu0 0
    %282 = vmatpush1.bf16.msra.mxu0 0
    %283 = vmatprep.subr.bf16.mxu0 0
    %284 = vmatpush1.bf16.msra.mxu0 0
    %285 = vmatprep.subr.bf16.mxu0 0
    %286 = vmatpush1.bf16.msra.mxu0 0
    %287 = vmatprep.subr.bf16.mxu0 0
    %288 = vmatpush1.bf16.msra.mxu0 0
    %289 = vmatprep.subr.bf16.mxu0 0
    %290 = vmatpush1.bf16.msra.mxu0 0
    %291 = vmatprep.subr.bf16.mxu0 0
    %292 = vmatpush1.bf16.msra.mxu0 0
    %293 = vmatprep.subr.bf16.mxu0 0
    %294 = vmatpush1.bf16.msra.mxu0 0
    %295 = vmatprep.subr.bf16.mxu0 0
    %296 = vmatpush1.bf16.msra.mxu0 0
    %297 = vmatprep.subr.bf16.mxu0 0
    %298 = vmatpush1.bf16.msra.mxu0 0
    %299 = vmatprep.mubr.bf16.mxu0 0
    %300 = vmatmul.mubr.bf16.gmra.mrb[0].mxu0 %v213
    %v301 = vpop.f32.mrb[0].mxu0
    %v302 = vadd.f32 %v253, %v301
    %v303 = vpop.f32.mrb[0].mxu0
    %v304 = vpop.f32.mrb[0].mxu0
    %v305 = vadd.f32 %v256, %v304
    %v306 = vpop.f32.mrb[0].mxu0
    %307 = vmatprep.mubr.bf16.mxu0 0
    %308 = vmatmul.mubr.bf16.gmra.mrb[0].mxu0 %v216
    %v309 = vpop.f32.mrb[0].mxu0
    %v310 = vadd.f32 %v261, %v309
    %v311 = vpop.f32.mrb[0].mxu0
    %v312 = vpop.f32.mrb[0].mxu0
    %v313 = vadd.f32 %v264, %v312
    %v314 = vpop.f32.mrb[0].mxu0
    %315 = vdwg.mxu0
    %v316 = vmul.f32 %v302, 0.5
    %v317 = vmul.f32 %v305, 0.5
    %v318 = vmul.f32 %v310, 0.5
    %v319 = vmul.f32 %v313, 0.5
    %v320 = vmul.f32 %v302, 0.70710677
    %v321 = vmul.f32 %v305, 0.70710677
    %v322 = vmul.f32 %v310, 0.70710677
    %v323 = vmul.f32 %v313, 0.70710677
    %v324 = verf.f32.pop %v320
    %v325 = verf.f32.pop %v321
    %v326 = verf.f32.pop %v322
    %v327 = verf.f32.pop %v323
    %v328 = vadd.f32 %v324, 1.0
    %v329 = vadd.f32 %v325, 1.0
    %v330 = vadd.f32 %v326, 1.0
    %v331 = vadd.f32 %v327, 1.0
    %v332 = vmul.f32 %v316, %v328
    %v333 = vmul.f32 %v317, %v329
    %v334 = vmul.f32 %v318, %v330
    %v335 = vmul.f32 %v319, %v331
    %v336 = vld [vmem:[%s3] sm:$0x1]
    %v338 = vlaneseq
    %v339 = vshrl.u32 %v338, 7
    %v340 = vsub.s32 0, %v339
    %v341 = vrot.slane %v336, %v340
    %v343 = vmul.f32 %v332, %v341
    %v344 = vmul.f32 %v333, %v341
    %v345 = vmul.f32 %v334, %v341
    %v346 = vmul.f32 %v335, %v341
    %v347 = vld [vmem:[%s4] sm:$0x1]
    %v349 = vlaneseq
    %v350 = vshrl.u32 %v349, 7
    %v351 = vsub.s32 0, %v350
    %v352 = vrot.slane %v347, %v351
    %v354 = vadd.f32 %v343, %v352
    %v355 = vadd.f32 %v344, %v352
    %v356 = vadd.f32 %v345, %v352
    %v357 = vadd.f32 %v346, %v352
    %358 = vst [vmem:[#allocation2] sm:$0xff] %v354
    %359 = vst [vmem:[#allocation2 + $0x8] sm:$0xff] %v355
    %360 = vst [vmem:[#allocation2 + $0x10] sm:$0xff] %v356
    %361 = vst [vmem:[#allocation2 + $0x18] sm:$0xff] %v357
    // Predicated region
    $region22: #{patch_embed.7} parent=1 // pred_check
      _
    $region23: #{patch_embed.7} parent=1 // pred_check_branch
      %363 = sbr.rel (0) target = $region25
    $region24: #{patch_embed.7} parent=1 // pred_region
      %s365 = ssub.s32 512, 512
      %366 = vsyncadd [#allocation3], %s365
      %s367 = sshll.u32 [#allocation2], 4
      %s368 = int_to_ptr.vmem [resolvable:$true] %s367
      %373 = dma.vmem_to_hbm [thread:$0]  %s368, 512, %s5, [#allocation3], 128, 128, 8
    $region25: #{patch_embed.7} parent=1 // pred_fallthru
      _
    // Predicated region
    $region26: #{patch_embed.7} parent=1 // pred_check
      _
    $region27: #{patch_embed.7} parent=1 // pred_check_branch
      %375 = sbr.rel (0) target = $region29
    $region28: #{patch_embed.7} parent=1 // pred_region
      %376 = dma.done [#allocation3], 512
    $region29: #{patch_embed.7} parent=1 // pred_fallthru
      _
    %377 = vsyncpa [#allocation3], 1

</llo_original>
